<compile_context>
chip_gen: v7x
topology: tpu7x:2x2x1
jax: 0.10.0
libtpu: 0.0.40
codegen_flags: <defaults>
</compile_context>

<pallas_src>
import jax
import jax.numpy as jnp
from jax import lax
from jax.experimental import pallas as pl
from jax.experimental.pallas import tpu as pltpu


def _mlp_kernel(x_ref, w1_ref, b1_ref, w2_ref, b2_ref, wt_ref, bt_ref, o_ref):
    # Dropout layers are identity at inference time.
    # Layer 1: (bt, in) @ (in, 1024); f32 accumulate, f32 bias, bf16 activation.
    h = jnp.dot(x_ref[...], w1_ref[...], preferred_element_type=jnp.float32)
    h = (h + b1_ref[...]).astype(jnp.bfloat16)
    # Layer 2: (bt, 1024) @ (1024, 128)
    h = jnp.dot(h, w2_ref[...], preferred_element_type=jnp.float32)
    h = (h + b2_ref[...]).astype(jnp.bfloat16)
    # Folded tail (128 -> 64 -> 16 -> 1), computed transposed so the output
    # block is lane-dense: (1,128) . (bt,128)^T -> (1, bt).
    out_t = lax.dot_general(
        wt_ref[...], h,
        dimension_numbers=(((1,), (1,)), ((), ())),
        preferred_element_type=jnp.float32,
    )
    o_ref[...] = (out_t + bt_ref[...]).astype(o_ref.dtype)


def aesthetic_predictor_forward(x, params, *, batch_tile=None):
    """x: (B, input_size) float32; params: name -> (w, b), w: (in,out), b: (1,out)."""
    B, in_size = x.shape
    if batch_tile is None:
        batch_tile = min(256, B)
    assert B % batch_tile == 0, "batch must be divisible by batch_tile"
    # Lane-dense output block needs a multiple of 128 (or a full-batch tile);
    # a multiple of 128 also satisfies the bf16 sublane packing (16) for x.
    assert batch_tile == B or batch_tile % 128 == 0, \
        "batch_tile must be a multiple of 128 (or equal to B)"

    (w1, b1), (w2, b2), (w3, b3), (w4, b4), (w5, b5) = (
        params["l1"], params["l2"], params["l3"], params["l4"], params["l5"]
    )

    # Fold the activation-free tail into one affine map (one-time, f32 host math).
    w_tail = w3 @ w4 @ w5                      # (128, 1)
    b_tail = (b3 @ w4 + b4) @ w5 + b5          # (1, 1)
    w_tail_t = w_tail.T                        # (1, 128) row for the transposed GEMV

    # bf16 matmul operands (MXU-native); biases / accumulation stay f32.
    x_bf = x.astype(jnp.bfloat16)
    w1_bf = w1.astype(jnp.bfloat16)
    w2_bf = w2.astype(jnp.bfloat16)
    wt_bf = w_tail_t.astype(jnp.bfloat16)
    b1_f = b1.astype(jnp.float32)
    b2_f = b2.astype(jnp.float32)
    bt_f = b_tail.astype(jnp.float32)

    def full_spec(shape):
        # Whole-array block with a constant index_map: DMA'd once, reused
        # across every grid step (no per-step re-fetch).
        return pl.BlockSpec(shape, lambda i: (0, 0))

    grid = (B // batch_tile,)

    out_row = pl.pallas_call(
        _mlp_kernel,
        out_shape=jax.ShapeDtypeStruct((1, B), jnp.float32),
        grid_spec=pltpu.PrefetchScalarGridSpec(
            num_scalar_prefetch=0,
            grid=grid,
            in_specs=[
                pl.BlockSpec((batch_tile, in_size), lambda i: (i, 0)),  # x batch tile
                full_spec(w1_bf.shape), full_spec(b1_f.shape),
                full_spec(w2_bf.shape), full_spec(b2_f.shape),
                full_spec(wt_bf.shape), full_spec(bt_f.shape),
            ],
            # Lane-dense output: each grid step writes one (1, batch_tile) row slab.
            out_specs=pl.BlockSpec((1, batch_tile), lambda i: (0, i)),
        ),
        compiler_params=pltpu.CompilerParams(
            dimension_semantics=("parallel",),  # lets v7x shard the batch over its 2 TCs
        ),
    )(x_bf, w1_bf, b1_f, w2_bf, b2_f, wt_bf, bt_f)

    # (1, B) lane-dense row slab -> (B, 1) column, matching the PyTorch output.
    return out_row.reshape(B, 1)


def init_params(key, input_size):
    """Deterministic synthetic parameters matching nn.Linear shapes.

    Weights are stored as (in_features, out_features) -- the transpose of
    PyTorch's (out, in) layout -- so the math is x @ W + b.  Biases are
    (1, out_features).
    """
    dims = [input_size, 1024, 128, 64, 16, 1]
    names = ["l1", "l2", "l3", "l4", "l5"]
    params = {}
    for name, d_in, d_out in zip(names, dims[:-1], dims[1:]):
        key, kw, kb = jax.random.split(key, 3)
        bound = 1.0 / (d_in ** 0.5)  # PyTorch default Linear init range
        w = jax.random.uniform(kw, (d_in, d_out), jnp.float32, -bound, bound)
        b = jax.random.uniform(kb, (1, d_out), jnp.float32, -bound, bound)
        params[name] = (w, b)
    return params


def reference_forward(x, params):
    # Full-precision (f32) reference of the original 5-layer chain.
    h = x
    for name in ["l1", "l2", "l3", "l4", "l5"]:
        w, b = params[name]
        h = h @ w + b
    return h


if __name__ == "__main__":
    key = jax.random.PRNGKey(0)
    key, kx, kp = jax.random.split(key, 3)

    BATCH = 256        # small but large enough for 2 grid steps at tile 128
    INPUT_SIZE = 64    # small synthetic embedding size (real model uses CLIP dims)
    BATCH_TILE = 128   # multiple of 128 (lane-dense output); >=2 steps for v7x megacore

    x = jax.random.normal(kx, (BATCH, INPUT_SIZE), jnp.float32)
    params = init_params(kp, INPUT_SIZE)

    out = aesthetic_predictor_forward(x, params, batch_tile=BATCH_TILE)
    out = jax.block_until_ready(out)

    ref = reference_forward(x, params)
    assert out.shape == (BATCH, 1), out.shape
    # bf16 matmul operands + folded tail => small, benign rounding vs f32 reference.
    assert jnp.allclose(out, ref, rtol=5e-2, atol=1e-2), (
        float(jnp.max(jnp.abs(out - ref))), "mismatch vs JAX f32 reference")

    print("KERNEL_OK")
</pallas_src>

<mosaic_0001>
module attributes {stable_mosaic.version = 11 : i64} {
  func.func @_mlp_kernel(%arg0: i32, %arg1: memref<128x64xbf16, #tpu.memory_space<vmem>>, %arg2: memref<64x1024xbf16, #tpu.memory_space<vmem>>, %arg3: memref<1x1024xf32, #tpu.memory_space<vmem>>, %arg4: memref<1024x128xbf16, #tpu.memory_space<vmem>>, %arg5: memref<1x128xf32, #tpu.memory_space<vmem>>, %arg6: memref<1x128xbf16, #tpu.memory_space<vmem>>, %arg7: memref<1x1xf32, #tpu.memory_space<vmem>>, %arg8: memref<1x128xf32, #tpu.memory_space<vmem>>) attributes {dimension_semantics = [#tpu.dimension_semantics<parallel>], iteration_bounds = array<i64: 2>, scalar_prefetch = 0 : i64, scratch_operands = 0 : i64, tpu.core_type = #tpu.core_type<tc>, window_params = [{transform_indices = @transform_0, window_bounds = array<i64: 128, 64>}, {pipeline_mode = #tpu.pipeline_mode<synchronous>, transform_indices = @transform_1, window_bounds = array<i64: 64, 1024>}, {pipeline_mode = #tpu.pipeline_mode<synchronous>, transform_indices = @transform_2, window_bounds = array<i64: 1, 1024>}, {pipeline_mode = #tpu.pipeline_mode<synchronous>, transform_indices = @transform_3, window_bounds = array<i64: 1024, 128>}, {pipeline_mode = #tpu.pipeline_mode<synchronous>, transform_indices = @transform_4, window_bounds = array<i64: 1, 128>}, {pipeline_mode = #tpu.pipeline_mode<synchronous>, transform_indices = @transform_5, window_bounds = array<i64: 1, 128>}, {pipeline_mode = #tpu.pipeline_mode<synchronous>, transform_indices = @transform_6, window_bounds = array<i64: 1, 1>}, {transform_indices = @transform_7, window_bounds = array<i64: 1, 128>}]} {
    %c0 = arith.constant 0 : index
    %c0_0 = arith.constant 0 : index
    %0 = vector.load %arg1[%c0, %c0_0] : memref<128x64xbf16, #tpu.memory_space<vmem>>, vector<128x64xbf16>
    %c0_1 = arith.constant 0 : index
    %c0_2 = arith.constant 0 : index
    %1 = vector.load %arg2[%c0_1, %c0_2] : memref<64x1024xbf16, #tpu.memory_space<vmem>>, vector<64x1024xbf16>
    %cst = arith.constant dense<0.000000e+00> : vector<128x1024xf32>
    %2 = tpu.matmul %0, %1, %cst {dimension_numbers = #tpu.dot_dimension_numbers<[1], [0], [0], [1], [0, 0, 1, 1], [], []>} : vector<128x64xbf16>, vector<64x1024xbf16>, vector<128x1024xf32> -> vector<128x1024xf32>
    %c0_3 = arith.constant 0 : index
    %c0_4 = arith.constant 0 : index
    %3 = vector.load %arg3[%c0_3, %c0_4] : memref<1x1024xf32, #tpu.memory_space<vmem>>, vector<1x1024xf32>
    %4 = vector.broadcast %3 : vector<1x1024xf32> to vector<128x1024xf32>
    %5 = arith.addf %2, %4 : vector<128x1024xf32>
    %6 = arith.truncf %5 : vector<128x1024xf32> to vector<128x1024xbf16>
    %c0_5 = arith.constant 0 : index
    %c0_6 = arith.constant 0 : index
    %7 = vector.load %arg4[%c0_5, %c0_6] : memref<1024x128xbf16, #tpu.memory_space<vmem>>, vector<1024x128xbf16>
    %cst_7 = arith.constant dense<0.000000e+00> : vector<128x128xf32>
    %8 = tpu.matmul %6, %7, %cst_7 {dimension_numbers = #tpu.dot_dimension_numbers<[1], [0], [0], [1], [0, 0, 1, 1], [], []>} : vector<128x1024xbf16>, vector<1024x128xbf16>, vector<128x128xf32> -> vector<128x128xf32>
    %c0_8 = arith.constant 0 : index
    %c0_9 = arith.constant 0 : index
    %9 = vector.load %arg5[%c0_8, %c0_9] : memref<1x128xf32, #tpu.memory_space<vmem>>, vector<1x128xf32>
    %10 = vector.broadcast %9 : vector<1x128xf32> to vector<128x128xf32>
    %11 = arith.addf %8, %10 : vector<128x128xf32>
    %12 = arith.truncf %11 : vector<128x128xf32> to vector<128x128xbf16>
    %c0_10 = arith.constant 0 : index
    %c0_11 = arith.constant 0 : index
    %13 = vector.load %arg6[%c0_10, %c0_11] : memref<1x128xbf16, #tpu.memory_space<vmem>>, vector<1x128xbf16>
    %cst_12 = arith.constant dense<0.000000e+00> : vector<1x128xf32>
    %14 = tpu.matmul %13, %12, %cst_12 {dimension_numbers = #tpu.dot_dimension_numbers<[1], [1], [0], [0], [0, 0, 1, 0], [], []>} : vector<1x128xbf16>, vector<128x128xbf16>, vector<1x128xf32> -> vector<1x128xf32>
    %c0_13 = arith.constant 0 : index
    %c0_14 = arith.constant 0 : index
    %15 = vector.load %arg7[%c0_13, %c0_14] : memref<1x1xf32, #tpu.memory_space<vmem>>, vector<1x1xf32>
    %16 = vector.broadcast %15 : vector<1x1xf32> to vector<1x128xf32>
    %17 = arith.addf %14, %16 : vector<1x128xf32>
    %c0_15 = arith.constant 0 : index
    %c0_16 = arith.constant 0 : index
    %18 = vector.load %arg8[%c0_15, %c0_16] : memref<1x128xf32, #tpu.memory_space<vmem>>, vector<1x128xf32>
    tpu.vector_store %arg8[%c0_15, %c0_16], %17 {strides = array<i32>} : memref<1x128xf32, #tpu.memory_space<vmem>>, vector<1x128xf32>,
    return
  }
  func.func @transform_0(%arg0: i32) -> (i32, i32) {
    %c0_i32 = arith.constant 0 : i32
    %c0_i32_0 = arith.constant 0 : i32
    return %arg0, %c0_i32 : i32, i32
  }
  func.func @transform_1(%arg0: i32) -> (i32, i32) {
    %c0_i32 = arith.constant 0 : i32
    %c0_i32_0 = arith.constant 0 : i32
    %c0_i32_1 = arith.constant 0 : i32
    return %c0_i32, %c0_i32_0 : i32, i32
  }
  func.func @transform_2(%arg0: i32) -> (i32, i32) {
    %c0_i32 = arith.constant 0 : i32
    %c0_i32_0 = arith.constant 0 : i32
    %c0_i32_1 = arith.constant 0 : i32
    return %c0_i32, %c0_i32_0 : i32, i32
  }
  func.func @transform_3(%arg0: i32) -> (i32, i32) {
    %c0_i32 = arith.constant 0 : i32
    %c0_i32_0 = arith.constant 0 : i32
    %c0_i32_1 = arith.constant 0 : i32
    return %c0_i32, %c0_i32_0 : i32, i32
  }
  func.func @transform_4(%arg0: i32) -> (i32, i32) {
    %c0_i32 = arith.constant 0 : i32
    %c0_i32_0 = arith.constant 0 : i32
    %c0_i32_1 = arith.constant 0 : i32
    return %c0_i32, %c0_i32_0 : i32, i32
  }
  func.func @transform_5(%arg0: i32) -> (i32, i32) {
    %c0_i32 = arith.constant 0 : i32
    %c0_i32_0 = arith.constant 0 : i32
    %c0_i32_1 = arith.constant 0 : i32
    return %c0_i32, %c0_i32_0 : i32, i32
  }
  func.func @transform_6(%arg0: i32) -> (i32, i32) {
    %c0_i32 = arith.constant 0 : i32
    %c0_i32_0 = arith.constant 0 : i32
    %c0_i32_1 = arith.constant 0 : i32
    return %c0_i32, %c0_i32_0 : i32, i32
  }
  func.func @transform_7(%arg0: i32) -> (i32, i32) {
    %c0_i32 = arith.constant 0 : i32
    %c0_i32_0 = arith.constant 0 : i32
    return %c0_i32, %arg0 : i32, i32
  }
}

</mosaic_0001>

<llo_original>
// kernel: tpu_custom_call.1
$region0: #{tpu_custom_call.1}
  #allocation0 [shape = 'u32[]', space=smem, size = 0x4, offset = 0x4, fixed_abs, tag = 'smem constant byte address 0x4 - core index']
  #allocation1 [shape = 'u32[144,128]{1,0:T(1,128)}', space=vmem, size = 0x12000, scoped, tag = 'internal scratch']
  #allocation2 [shape = 'f32[1,1]{1,0:T(1,128)S(1)}', space=vmem, size = 0x200, scoped, tag = 'scoped memory for tpu_custom_call.1']
  %s0 = inlined_call_operand.vmem [shape: bf16[256,64], index: 0, kind: input, shape index: {}]
  %s1 = inlined_call_operand.hbm [shape: bf16[64,1024], index: 1, kind: input, shape index: {}]
  %s2 = inlined_call_operand.vmem [shape: f32[1,1024], index: 2, kind: input, shape index: {}]
  %s3 = inlined_call_operand.hbm [shape: bf16[1024,128], index: 3, kind: input, shape index: {}]
  %s4 = inlined_call_operand.vmem [shape: f32[1,128], index: 4, kind: input, shape index: {}]
  %s5 = inlined_call_operand.vmem [shape: bf16[1,128], index: 5, kind: input, shape index: {}]
  %s6 = inlined_call_operand.<no memory space> [shape: f32[1,1], index: 6, kind: input, shape index: {}]
  %s7 = inlined_call_operand.hbm [shape: f32[1,256], index: 7, kind: output, shape index: {}]
  %s8 = sld [smem:[#allocation0]]
  $region69: #{tpu_custom_call.1} parent=0
    _
  %s10 = ssub.s32 1, %s8
  %s11 = scalar_select 0, %s10, %s8
  %v12 = vstv %s6
  %13 = vst [vmem:[#allocation2] sm:$0x1] %v12
  $region1: #{tpu_custom_call.1} parent=0
    #allocation3 [shape = 'u8[131072]{0}', space=vmem, size = 0x20000, scoped, tag = 'input window, operand 1, single buffered']
    #allocation4 [shape = 's32[2]{0}', space=sflag, size = 0x8, scoped, tag = 'scoped memory for tpu_custom_call.1']
    #allocation5 [shape = 's32[2]{0}', space=sflag, size = 0x8, scoped, tag = 'scoped memory for tpu_custom_call.1']
    #allocation6 [shape = 'u8[262144]{0}', space=vmem, size = 0x40000, scoped, tag = 'input window, operand 3, single buffered']
    #allocation7 [shape = 's32[1]{0}', space=sflag, size = 0x4, scoped, tag = 'scoped memory for tpu_custom_call.1']
    #allocation8 [shape = 'u8[1024]{0}', space=vmem, size = 0x400, scoped, tag = 'output window, operand 0']
    %14 = vsyncpa [#allocation4], 0
    %15 = vsyncpa [#allocation7], 0
    %16 = vsyncpa [#allocation5], 0
    %s17 = scalar_lea.sflag [#allocation5], 1
    %18 = vsyncpa %s17, 0
    loop: start=0, step=1, limit=4
    $region2: #{tpu_custom_call.1} parent=1 // loop_pre_header
      _
    $region3: #{tpu_custom_call.1} parent=1 // loop_header
      %s20 = sphi 0, %s24
      %p21 = scmp.ge.s32.totalorder %s20, 4
      %s30 = sphi 0, %s32
      %s33 = sphi 0, %s30
      %s34 = sphi 0, %s33
      %s50 = sphi 0, %s34
      %s54 = sphi 0, %s54
      %s56 = sphi 0, %s54
      %s57 = sphi 0, %s56
      %s71 = sphi 0, %s57
      %s75 = sphi 0, %s75
      %s77 = sphi 0, %s75
      %s78 = sphi 0, %s77
      %s92 = sphi 0, %s78
      %s96 = sphi 0, %s96
      %s98 = sphi 0, %s96
      %s99 = sphi 0, %s98
      %s113 = sphi 0, %s99
      %s117 = sphi 0, %s117
      %s119 = sphi 0, %s117
      %s120 = sphi 0, %s119
      %s134 = sphi 0, %s120
      %s138 = sphi 0, %s138
      %s140 = sphi 0, %s138
      %s141 = sphi 0, %s140
      %s155 = sphi 0, %s141
      %s159 = sphi 0, %s159
      %s161 = sphi 0, %s159
      %s162 = sphi 0, %s161
      %s176 = sphi 0, %s162
      %s182 = sphi 0, %s184
      %s185 = sphi 0, %s182
      %s186 = sphi 0, %s185
      %s202 = sphi 0, %s186
    $region4: #{tpu_custom_call.1} parent=1 // loop_header_branch
      %23 = sbr.rel (%p21) target = $region8
    $region5: #{tpu_custom_call.1} parent=1 // loop_body
      %s25 = ssub.s32 %s20, 1
      %s26 = ssub.s32 %s20, 2
      %s27 = sadd.s32 %s20, 1
      %s28 = ssub.s32 %s20, %s27
      %p29 = scmp.eq.s32.totalorder %s28, 0
      %s31 = sadd.s32 %s30, 1
      %s32 = scalar_select %p29, %s30, %s31
      %p35 = pneg %p29
      %p36 = scmp.eq.s32.totalorder %s20, 1
      %p37 = por %p35, %p36
      %p38 = scmp.ne.s32.totalorder %s30, %s33
      %p39 = scmp.eq.s32.totalorder %s20, 0
      %p40 = por %p38, %p39
      %p41 = scmp.ne.s32.totalorder %s30, %s33
      %p42 = scmp.eq.s32.totalorder %s25, 1
      %p43 = por %p41, %p42
      %p44 = scmp.ne.s32.totalorder %s33, %s34
      %p45 = scmp.eq.s32.totalorder %s25, 0
      %p46 = por %p44, %p45
      %p47 = scmp.ne.s32.totalorder %s33, %s34
      %p48 = scmp.eq.s32.totalorder %s26, 1
      %p49 = por %p47, %p48
      %p51 = scmp.ne.s32.totalorder %s34, %s50
      %p52 = scmp.eq.s32.totalorder %s26, 0
      %p53 = por %p51, %p52
      %s55 = sadd.s32 %s54, 1
      %p58 = scmp.eq.s32.totalorder %s20, 1
      %p59 = scmp.ne.s32.totalorder %s54, %s56
      %p60 = scmp.eq.s32.totalorder %s20, 0
      %p61 = por %p59, %p60
      %p62 = scmp.ne.s32.totalorder %s54, %s56
      %p63 = scmp.eq.s32.totalorder %s25, 1
      %p64 = por %p62, %p63
      %p65 = scmp.ne.s32.totalorder %s56, %s57
      %p66 = scmp.eq.s32.totalorder %s25, 0
      %p67 = por %p65, %p66
      %p68 = scmp.ne.s32.totalorder %s56, %s57
      %p69 = scmp.eq.s32.totalorder %s26, 1
      %p70 = por %p68, %p69
      %p72 = scmp.ne.s32.totalorder %s57, %s71
      %p73 = scmp.eq.s32.totalorder %s26, 0
      %p74 = por %p72, %p73
      %s76 = sadd.s32 %s75, 1
      %p79 = scmp.eq.s32.totalorder %s20, 1
      %p80 = scmp.ne.s32.totalorder %s75, %s77
      %p81 = scmp.eq.s32.totalorder %s20, 0
      %p82 = por %p80, %p81
      %p83 = scmp.ne.s32.totalorder %s75, %s77
      %p84 = scmp.eq.s32.totalorder %s25, 1
      %p85 = por %p83, %p84
      %p86 = scmp.ne.s32.totalorder %s77, %s78
      %p87 = scmp.eq.s32.totalorder %s25, 0
      %p88 = por %p86, %p87
      %p89 = scmp.ne.s32.totalorder %s77, %s78
      %p90 = scmp.eq.s32.totalorder %s26, 1
      %p91 = por %p89, %p90
      %p93 = scmp.ne.s32.totalorder %s78, %s92
      %p94 = scmp.eq.s32.totalorder %s26, 0
      %p95 = por %p93, %p94
      %s97 = sadd.s32 %s96, 1
      %p100 = scmp.eq.s32.totalorder %s20, 1
      %p101 = scmp.ne.s32.totalorder %s96, %s98
      %p102 = scmp.eq.s32.totalorder %s20, 0
      %p103 = por %p101, %p102
      %p104 = scmp.ne.s32.totalorder %s96, %s98
      %p105 = scmp.eq.s32.totalorder %s25, 1
      %p106 = por %p104, %p105
      %p107 = scmp.ne.s32.totalorder %s98, %s99
      %p108 = scmp.eq.s32.totalorder %s25, 0
      %p109 = por %p107, %p108
      %p110 = scmp.ne.s32.totalorder %s98, %s99
      %p111 = scmp.eq.s32.totalorder %s26, 1
      %p112 = por %p110, %p111
      %p114 = scmp.ne.s32.totalorder %s99, %s113
      %p115 = scmp.eq.s32.totalorder %s26, 0
      %p116 = por %p114, %p115
      %s118 = sadd.s32 %s117, 1
      %p121 = scmp.eq.s32.totalorder %s20, 1
      %p122 = scmp.ne.s32.totalorder %s117, %s119
      %p123 = scmp.eq.s32.totalorder %s20, 0
      %p124 = por %p122, %p123
      %p125 = scmp.ne.s32.totalorder %s117, %s119
      %p126 = scmp.eq.s32.totalorder %s25, 1
      %p127 = por %p125, %p126
      %p128 = scmp.ne.s32.totalorder %s119, %s120
      %p129 = scmp.eq.s32.totalorder %s25, 0
      %p130 = por %p128, %p129
      %p131 = scmp.ne.s32.totalorder %s119, %s120
      %p132 = scmp.eq.s32.totalorder %s26, 1
      %p133 = por %p131, %p132
      %p135 = scmp.ne.s32.totalorder %s120, %s134
      %p136 = scmp.eq.s32.totalorder %s26, 0
      %p137 = por %p135, %p136
      %s139 = sadd.s32 %s138, 1
      %p142 = scmp.eq.s32.totalorder %s20, 1
      %p143 = scmp.ne.s32.totalorder %s138, %s140
      %p144 = scmp.eq.s32.totalorder %s20, 0
      %p145 = por %p143, %p144
      %p146 = scmp.ne.s32.totalorder %s138, %s140
      %p147 = scmp.eq.s32.totalorder %s25, 1
      %p148 = por %p146, %p147
      %p149 = scmp.ne.s32.totalorder %s140, %s141
      %p150 = scmp.eq.s32.totalorder %s25, 0
      %p151 = por %p149, %p150
      %p152 = scmp.ne.s32.totalorder %s140, %s141
      %p153 = scmp.eq.s32.totalorder %s26, 1
      %p154 = por %p152, %p153
      %p156 = scmp.ne.s32.totalorder %s141, %s155
      %p157 = scmp.eq.s32.totalorder %s26, 0
      %p158 = por %p156, %p157
      %s160 = sadd.s32 %s159, 1
      %p163 = scmp.eq.s32.totalorder %s20, 1
      %p164 = scmp.ne.s32.totalorder %s159, %s161
      %p165 = scmp.eq.s32.totalorder %s20, 0
      %p166 = por %p164, %p165
      %p167 = scmp.ne.s32.totalorder %s159, %s161
      %p168 = scmp.eq.s32.totalorder %s25, 1
      %p169 = por %p167, %p168
      %p170 = scmp.ne.s32.totalorder %s161, %s162
      %p171 = scmp.eq.s32.totalorder %s25, 0
      %p172 = por %p170, %p171
      %p173 = scmp.ne.s32.totalorder %s161, %s162
      %p174 = scmp.eq.s32.totalorder %s26, 1
      %p175 = por %p173, %p174
      %p177 = scmp.ne.s32.totalorder %s162, %s176
      %p178 = scmp.eq.s32.totalorder %s26, 0
      %p179 = por %p177, %p178
      %s180 = ssub.s32 %s20, %s27
      %p181 = scmp.eq.s32.totalorder %s180, 0
      %s183 = sadd.s32 %s182, 1
      %s184 = scalar_select %p181, %s182, %s183
      %p187 = pneg %p181
      %p188 = scmp.eq.s32.totalorder %s20, 1
      %p189 = por %p187, %p188
      %p190 = scmp.ne.s32.totalorder %s182, %s185
      %p191 = scmp.eq.s32.totalorder %s20, 0
      %p192 = por %p190, %p191
      %p193 = scmp.ne.s32.totalorder %s182, %s185
      %p194 = scmp.eq.s32.totalorder %s25, 1
      %p195 = por %p193, %p194
      %p196 = scmp.ne.s32.totalorder %s185, %s186
      %p197 = scmp.eq.s32.totalorder %s25, 0
      %p198 = por %p196, %p197
      %p199 = scmp.ne.s32.totalorder %s185, %s186
      %p200 = scmp.eq.s32.totalorder %s26, 1
      %p201 = por %p199, %p200
      %p203 = scmp.ne.s32.totalorder %s186, %s202
      %p204 = scmp.eq.s32.totalorder %s26, 0
      %p205 = por %p203, %p204
      %p206 = scmp.le.s32.totalorder 1, %s20
      %p207 = scmp.lt.s32.totalorder %s20, 3
      %p208 = pnand %p206, %p207
      %p209 = pneg %p208
      // Predicated region
      $region9: #{tpu_custom_call.1} parent=5 // pred_check
        _
      $region10: #{tpu_custom_call.1} parent=5 // pred_check_branch
        %211 = sbr.rel (%p208) target = $region12
      $region11: #{tpu_custom_call.1} parent=5 // pred_region
        %s212 = ssub.s32 %s20, 1
        // Predicated region
        $region13: #{tpu_custom_call.1} parent=11 // pred_check
          %p213 = pneg %p67
        $region14: #{tpu_custom_call.1} parent=11 // pred_check_branch
          %215 = sbr.rel (%p213) target = $region16
        $region15: #{tpu_custom_call.1} parent=11 // pred_region
          %s217 = ssub.s32 4096, 4096
          %218 = vsyncadd [#allocation4], %s217
          %s219 = sshll.u32 [#allocation3], 4
          %s220 = int_to_ptr.vmem [resolvable:$true] %s219
          %225 = dma.hbm_to_vmem [thread:$0]  %s1, 4096, %s220, [#allocation4], 512, 512, 32
        $region16: #{tpu_custom_call.1} parent=11 // pred_fallthru
          _
        // Predicated region
        $region17: #{tpu_custom_call.1} parent=11 // pred_check
          %p226 = pneg %p88
        $region18: #{tpu_custom_call.1} parent=11 // pred_check_branch
          %228 = sbr.rel (%p226) target = $region20
        $region19: #{tpu_custom_call.1} parent=11 // pred_region
          _
        $region20: #{tpu_custom_call.1} parent=11 // pred_fallthru
          _
        // Predicated region
        $region21: #{tpu_custom_call.1} parent=11 // pred_check
          %p229 = pneg %p109
        $region22: #{tpu_custom_call.1} parent=11 // pred_check_branch
          %231 = sbr.rel (%p229) target = $region24
        $region23: #{tpu_custom_call.1} parent=11 // pred_region
          %s233 = ssub.s32 8192, 8192
          %234 = vsyncadd [#allocation7], %s233
          %s235 = sshll.u32 [#allocation6], 4
          %s236 = int_to_ptr.vmem [resolvable:$true] %s235
          %241 = dma.hbm_to_vmem [thread:$0]  %s3, 8192, %s236, [#allocation7], 64, 64, 4
        $region24: #{tpu_custom_call.1} parent=11 // pred_fallthru
          _
        // Predicated region
        $region25: #{tpu_custom_call.1} parent=11 // pred_check
          %p242 = pneg %p130
        $region26: #{tpu_custom_call.1} parent=11 // pred_check_branch
          %244 = sbr.rel (%p242) target = $region28
        $region27: #{tpu_custom_call.1} parent=11 // pred_region
          _
        $region28: #{tpu_custom_call.1} parent=11 // pred_fallthru
          _
        // Predicated region
        $region29: #{tpu_custom_call.1} parent=11 // pred_check
          %p245 = pneg %p151
        $region30: #{tpu_custom_call.1} parent=11 // pred_check_branch
          %247 = sbr.rel (%p245) target = $region32
        $region31: #{tpu_custom_call.1} parent=11 // pred_region
          _
        $region32: #{tpu_custom_call.1} parent=11 // pred_fallthru
          _
        // Predicated region
        $region33: #{tpu_custom_call.1} parent=11 // pred_check
          %p248 = pneg %p172
        $region34: #{tpu_custom_call.1} parent=11 // pred_check_branch
          %250 = sbr.rel (%p248) target = $region36
        $region35: #{tpu_custom_call.1} parent=11 // pred_region
          _
        $region36: #{tpu_custom_call.1} parent=11 // pred_fallthru
          _
      $region12: #{tpu_custom_call.1} parent=5 // pred_fallthru
        _
      %p251 = scmp.lt.s32.totalorder %s20, 2
      // Predicated region
      $region37: #{tpu_custom_call.1} parent=5 // pred_check
        %p252 = pneg %p251
      $region38: #{tpu_custom_call.1} parent=5 // pred_check_branch
        %254 = sbr.rel (%p252) target = $region40
      $region39: #{tpu_custom_call.1} parent=5 // pred_region
        // Predicated region
        $region41: #{tpu_custom_call.1} parent=39 // pred_check
          %p255 = pneg %p40
        $region42: #{tpu_custom_call.1} parent=39 // pred_check_branch
          %257 = sbr.rel (%p255) target = $region44
        $region43: #{tpu_custom_call.1} parent=39 // pred_region
          %s258 = smul.u32 16, %s20
          %p259 = scmp.lt.s32.totalorder %s258, 31
          %s260 = scalar_select %p259, %s258, 31
          %s261 = smul.addr %s260, 4
          %s262 = scalar_lea.vmem %s0, %s261
          %s263 = smul.u32 16, %s20
        $region44: #{tpu_custom_call.1} parent=39 // pred_fallthru
          _
      $region40: #{tpu_custom_call.1} parent=5 // pred_fallthru
        _
      %p264 = scmp.le.s32.totalorder 1, %s20
      %p265 = scmp.lt.s32.totalorder %s20, 3
      %p266 = pnand %p264, %p265
      %p267 = pneg %p266
      // Predicated region
      $region45: #{tpu_custom_call.1} parent=5 // pred_check
        _
      $region46: #{tpu_custom_call.1} parent=5 // pred_check_branch
        %269 = sbr.rel (%p266) target = $region48
      $region47: #{tpu_custom_call.1} parent=5 // pred_region
        %s270 = ssub.s32 %s20, 1
        // Predicated region
        $region49: #{tpu_custom_call.1} parent=47 // pred_check
          %p271 = pneg %p67
        $region50: #{tpu_custom_call.1} parent=47 // pred_check_branch
          %273 = sbr.rel (%p271) target = $region52
        $region51: #{tpu_custom_call.1} parent=47 // pred_region
          %274 = dma.done [#allocation4], 4096
        $region52: #{tpu_custom_call.1} parent=47 // pred_fallthru
          _
        // Predicated region
        $region53: #{tpu_custom_call.1} parent=47 // pred_check
          %p275 = pneg %p109
        $region54: #{tpu_custom_call.1} parent=47 // pred_check_branch
          %277 = sbr.rel (%p275) target = $region56
        $region55: #{tpu_custom_call.1} parent=47 // pred_region
          %278 = dma.done [#allocation7], 8192
        $region56: #{tpu_custom_call.1} parent=47 // pred_fallthru
          _
        %s279 = smul.u32 16, %s25
        %p280 = scmp.lt.s32.totalorder %s279, 31
        %s281 = scalar_select %p280, %s279, 31
        %s282 = smul.addr %s281, 4
        %s283 = scalar_lea.vmem %s0, %s282
        %p284 = pneg %p46
        %p285 = pneg %p43
        %p286 = pneg %p67
        %p287 = pneg %p64
        %p288 = pneg %p88
        %p289 = pneg %p85
        %p290 = pneg %p109
        %p291 = pneg %p106
        %p292 = pneg %p130
        %p293 = pneg %p127
        %p294 = pneg %p151
        %p295 = pneg %p148
        %p296 = pneg %p172
        %p297 = pneg %p169
        %p298 = pneg %p198
        %p299 = pneg %p195
        %s300 = sand.u32 %s185, 1
        %s301 = scalar_lea.sflag [#allocation5], %s300
        %s302 = sand.u32 %s185, 1
        %s303 = scalar_lea.vmem [#allocation8], %s302
        %s304 = smul.u32 16, %s25
        %p305 = scmp.lt.s32.totalorder %s304, 31
        %s306 = scalar_select %p305, %s304, 31
        %s307 = smul.addr %s306, 4
        %s308 = scalar_lea.vmem %s0, %s307
        %s309 = smul.u32 16, %s25
        %v311 = vld [vmem:[%s308] sm:$0xf]
        %v312 = vld [vmem:[%s308 + $0x4] sm:$0xf]
        %v313 = vld [vmem:[%s308 + $0x8] sm:$0xf]
        %v314 = vld [vmem:[%s308 + $0xc] sm:$0xf]
        %v315 = vld [vmem:[%s308 + $0x10] sm:$0xf]
        %v316 = vld [vmem:[%s308 + $0x14] sm:$0xf]
        %v317 = vld [vmem:[%s308 + $0x18] sm:$0xf]
        %v318 = vld [vmem:[%s308 + $0x1c] sm:$0xf]
        %v319 = vld [vmem:[%s308 + $0x20] sm:$0xf]
        %v320 = vld [vmem:[%s308 + $0x24] sm:$0xf]
        %v321 = vld [vmem:[%s308 + $0x28] sm:$0xf]
        %v322 = vld [vmem:[%s308 + $0x2c] sm:$0xf]
        %v323 = vld [vmem:[%s308 + $0x30] sm:$0xf]
        %v324 = vld [vmem:[%s308 + $0x34] sm:$0xf]
        %v325 = vld [vmem:[%s308 + $0x38] sm:$0xf]
        %v326 = vld [vmem:[%s308 + $0x3c] sm:$0xf]
        %v327 = vld [vmem:[#allocation3] sm:$0xff]
        %v328 = vld [vmem:[#allocation3 + $0x8] sm:$0xff]
        %v329 = vld [vmem:[#allocation3 + $0x10] sm:$0xff]
        %v330 = vld [vmem:[#allocation3 + $0x18] sm:$0xff]
        %v331 = vld [vmem:[#allocation3 + $0x20] sm:$0xff]
        %v332 = vld [vmem:[#allocation3 + $0x28] sm:$0xff]
        %v333 = vld [vmem:[#allocation3 + $0x30] sm:$0xff]
        %v334 = vld [vmem:[#allocation3 + $0x38] sm:$0xff]
        %v335 = vld [vmem:[#allocation3 + $0x40] sm:$0xff]
        %v336 = vld [vmem:[#allocation3 + $0x48] sm:$0xff]
        %v337 = vld [vmem:[#allocation3 + $0x50] sm:$0xff]
        %v338 = vld [vmem:[#allocation3 + $0x58] sm:$0xff]
        %v339 = vld [vmem:[#allocation3 + $0x60] sm:$0xff]
        %v340 = vld [vmem:[#allocation3 + $0x68] sm:$0xff]
        %v341 = vld [vmem:[#allocation3 + $0x70] sm:$0xff]
        %v342 = vld [vmem:[#allocation3 + $0x78] sm:$0xff]
        %v343 = vld [vmem:[#allocation3 + $0x80] sm:$0xff]
        %v344 = vld [vmem:[#allocation3 + $0x88] sm:$0xff]
        %v345 = vld [vmem:[#allocation3 + $0x90] sm:$0xff]
        %v346 = vld [vmem:[#allocation3 + $0x98] sm:$0xff]
        %v347 = vld [vmem:[#allocation3 + $0xa0] sm:$0xff]
        %v348 = vld [vmem:[#allocation3 + $0xa8] sm:$0xff]
        %v349 = vld [vmem:[#allocation3 + $0xb0] sm:$0xff]
        %v350 = vld [vmem:[#allocation3 + $0xb8] sm:$0xff]
        %v351 = vld [vmem:[#allocation3 + $0xc0] sm:$0xff]
        %v352 = vld [vmem:[#allocation3 + $0xc8] sm:$0xff]
        %v353 = vld [vmem:[#allocation3 + $0xd0] sm:$0xff]
        %v354 = vld [vmem:[#allocation3 + $0xd8] sm:$0xff]
        %v355 = vld [vmem:[#allocation3 + $0xe0] sm:$0xff]
        %v356 = vld [vmem:[#allocation3 + $0xe8] sm:$0xff]
        %v357 = vld [vmem:[#allocation3 + $0xf0] sm:$0xff]
        %v358 = vld [vmem:[#allocation3 + $0xf8] sm:$0xff]
        %v359 = vld [vmem:[%s2] sm:$0xff]
        %v361 = vlaneseq
        %v362 = vshrl.u32 %v361, 7
        %v363 = vsub.s32 0, %v362
        %v364 = vrot.slane %v359, %v363
        %v365 = vlaneseq
        %v366 = vshrl.u32 %v365, 7
        %v367 = vsub.s32 1, %v366
        %v368 = vrot.slane %v359, %v367
        %v369 = vlaneseq
        %v370 = vshrl.u32 %v369, 7
        %v371 = vsub.s32 2, %v370
        %v372 = vrot.slane %v359, %v371
        %v373 = vlaneseq
        %v374 = vshrl.u32 %v373, 7
        %v375 = vsub.s32 3, %v374
        %v376 = vrot.slane %v359, %v375
        %v377 = vlaneseq
        %v378 = vshrl.u32 %v377, 7
        %v379 = vsub.s32 4, %v378
        %v380 = vrot.slane %v359, %v379
        %v381 = vlaneseq
        %v382 = vshrl.u32 %v381, 7
        %v383 = vsub.s32 5, %v382
        %v384 = vrot.slane %v359, %v383
        %v385 = vlaneseq
        %v386 = vshrl.u32 %v385, 7
        %v387 = vsub.s32 6, %v386
        %v388 = vrot.slane %v359, %v387
        %v389 = vlaneseq
        %v390 = vshrl.u32 %v389, 7
        %v391 = vsub.s32 7, %v390
        %v392 = vrot.slane %v359, %v391
        %v417 = vunpack.c.l.b16 %v311
        %v418 = vunpack.c.l.b16 %v312
        %v419 = vunpack.c.l.b16 %v313
        %v420 = vunpack.c.l.b16 %v314
        %v421 = vunpack.c.l.b16 %v315
        %v422 = vunpack.c.l.b16 %v316
        %v423 = vunpack.c.l.b16 %v317
        %v424 = vunpack.c.l.b16 %v318
        %v425 = vunpack.c.l.b16 %v319
        %v426 = vunpack.c.l.b16 %v320
        %v427 = vunpack.c.l.b16 %v321
        %v428 = vunpack.c.l.b16 %v322
        %v429 = vunpack.c.l.b16 %v323
        %v430 = vunpack.c.l.b16 %v324
        %v431 = vunpack.c.l.b16 %v325
        %v432 = vunpack.c.l.b16 %v326
        %v433 = vpack.c.b16 %v418, %v417
        %v434 = vpack.c.b16 %v420, %v419
        %v435 = vpack.c.b16 %v422, %v421
        %v436 = vpack.c.b16 %v424, %v423
        %v437 = vpack.c.b16 %v426, %v425
        %v438 = vpack.c.b16 %v428, %v427
        %v439 = vpack.c.b16 %v430, %v429
        %v440 = vpack.c.b16 %v432, %v431
        %v473 = vunpack.c.l.b16 %v327
        %v474 = vunpack.c.h.b16 %v327
        %v475 = vunpack.c.l.b16 %v328
        %v476 = vunpack.c.h.b16 %v328
        %v477 = vunpack.c.l.b16 %v329
        %v478 = vunpack.c.h.b16 %v329
        %v479 = vunpack.c.l.b16 %v330
        %v480 = vunpack.c.h.b16 %v330
        %v481 = vunpack.c.l.b16 %v331
        %v482 = vunpack.c.h.b16 %v331
        %v483 = vunpack.c.l.b16 %v332
        %v484 = vunpack.c.h.b16 %v332
        %v485 = vunpack.c.l.b16 %v333
        %v486 = vunpack.c.h.b16 %v333
        %v487 = vunpack.c.l.b16 %v334
        %v488 = vunpack.c.h.b16 %v334
        %v489 = vunpack.c.l.b16 %v335
        %v490 = vunpack.c.h.b16 %v335
        %v491 = vunpack.c.l.b16 %v336
        %v492 = vunpack.c.h.b16 %v336
        %v493 = vunpack.c.l.b16 %v337
        %v494 = vunpack.c.h.b16 %v337
        %v495 = vunpack.c.l.b16 %v338
        %v496 = vunpack.c.h.b16 %v338
        %v497 = vunpack.c.l.b16 %v339
        %v498 = vunpack.c.h.b16 %v339
        %v499 = vunpack.c.l.b16 %v340
        %v500 = vunpack.c.h.b16 %v340
        %v501 = vunpack.c.l.b16 %v341
        %v502 = vunpack.c.h.b16 %v341
        %v503 = vunpack.c.l.b16 %v342
        %v504 = vunpack.c.h.b16 %v342
        %v505 = vunpack.c.l.b16 %v343
        %v506 = vunpack.c.h.b16 %v343
        %v507 = vunpack.c.l.b16 %v344
        %v508 = vunpack.c.h.b16 %v344
        %v509 = vunpack.c.l.b16 %v345
        %v510 = vunpack.c.h.b16 %v345
        %v511 = vunpack.c.l.b16 %v346
        %v512 = vunpack.c.h.b16 %v346
        %v513 = vunpack.c.l.b16 %v347
        %v514 = vunpack.c.h.b16 %v347
        %v515 = vunpack.c.l.b16 %v348
        %v516 = vunpack.c.h.b16 %v348
        %v517 = vunpack.c.l.b16 %v349
        %v518 = vunpack.c.h.b16 %v349
        %v519 = vunpack.c.l.b16 %v350
        %v520 = vunpack.c.h.b16 %v350
        %v521 = vunpack.c.l.b16 %v351
        %v522 = vunpack.c.h.b16 %v351
        %v523 = vunpack.c.l.b16 %v352
        %v524 = vunpack.c.h.b16 %v352
        %v525 = vunpack.c.l.b16 %v353
        %v526 = vunpack.c.h.b16 %v353
        %v527 = vunpack.c.l.b16 %v354
        %v528 = vunpack.c.h.b16 %v354
        %v529 = vunpack.c.l.b16 %v355
        %v530 = vunpack.c.h.b16 %v355
        %v531 = vunpack.c.l.b16 %v356
        %v532 = vunpack.c.h.b16 %v356
        %v533 = vunpack.c.l.b16 %v357
        %v534 = vunpack.c.h.b16 %v357
        %v535 = vunpack.c.l.b16 %v358
        %v536 = vunpack.c.h.b16 %v358
        %v537 = vpack.c.b16 %v481, %v473
        %v538 = vpack.c.b16 %v482, %v474
        %v539 = vpack.c.b16 %v483, %v475
        %v540 = vpack.c.b16 %v484, %v476
        %v541 = vpack.c.b16 %v485, %v477
        %v542 = vpack.c.b16 %v486, %v478
        %v543 = vpack.c.b16 %v487, %v479
        %v544 = vpack.c.b16 %v488, %v480
        %v545 = vpack.c.b16 %v497, %v489
        %v546 = vpack.c.b16 %v498, %v490
        %v547 = vpack.c.b16 %v499, %v491
        %v548 = vpack.c.b16 %v500, %v492
        %v549 = vpack.c.b16 %v501, %v493
        %v550 = vpack.c.b16 %v502, %v494
        %v551 = vpack.c.b16 %v503, %v495
        %v552 = vpack.c.b16 %v504, %v496
        %v553 = vpack.c.b16 %v513, %v505
        %v554 = vpack.c.b16 %v514, %v506
        %v555 = vpack.c.b16 %v515, %v507
        %v556 = vpack.c.b16 %v516, %v508
        %v557 = vpack.c.b16 %v517, %v509
        %v558 = vpack.c.b16 %v518, %v510
        %v559 = vpack.c.b16 %v519, %v511
        %v560 = vpack.c.b16 %v520, %v512
        %v561 = vpack.c.b16 %v529, %v521
        %v562 = vpack.c.b16 %v530, %v522
        %v563 = vpack.c.b16 %v531, %v523
        %v564 = vpack.c.b16 %v532, %v524
        %v565 = vpack.c.b16 %v533, %v525
        %v566 = vpack.c.b16 %v534, %v526
        %v567 = vpack.c.b16 %v535, %v527
        %v568 = vpack.c.b16 %v536, %v528
        %vm601 = vcmask 523264
        %v603 = vsel %vm601, %v433, 0
        %v606 = vsel %vm601, %v434, 0
        %v609 = vsel %vm601, %v435, 0
        %v612 = vsel %vm601, %v436, 0
        %v615 = vsel %vm601, %v437, 0
        %v618 = vsel %vm601, %v438, 0
        %v621 = vsel %vm601, %v439, 0
        %v624 = vsel %vm601, %v440, 0
        %626 = vmatprep.subr.bf16.mxu0 %v538
        %627 = vmatpush1.bf16.msra.mxu0 %v537
        %628 = vmatprep.subr.bf16.mxu0 %v546
        %629 = vmatpush1.bf16.msra.mxu0 %v545
        %630 = vmatprep.subr.bf16.mxu0 %v554
        %631 = vmatpush1.bf16.msra.mxu0 %v553
        %632 = vmatprep.subr.bf16.mxu0 %v562
        %633 = vmatpush1.bf16.msra.mxu0 %v561
        %634 = vmatprep.subr.bf16.mxu0 0
        %635 = vmatpush1.bf16.msra.mxu0 0
        %636 = vmatprep.subr.bf16.mxu0 0
        %637 = vmatpush1.bf16.msra.mxu0 0
        %638 = vmatprep.subr.bf16.mxu0 0
        %639 = vmatpush1.bf16.msra.mxu0 0
        %640 = vmatprep.subr.bf16.mxu0 0
        %641 = vmatpush1.bf16.msra.mxu0 0
        %642 = vmatprep.subr.bf16.mxu0 0
        %643 = vmatpush1.bf16.msra.mxu0 0
        %644 = vmatprep.subr.bf16.mxu0 0
        %645 = vmatpush1.bf16.msra.mxu0 0
        %646 = vmatprep.subr.bf16.mxu0 0
        %647 = vmatpush1.bf16.msra.mxu0 0
        %648 = vmatprep.subr.bf16.mxu0 0
        %649 = vmatpush1.bf16.msra.mxu0 0
        %650 = vmatprep.subr.bf16.mxu0 0
        %651 = vmatpush1.bf16.msra.mxu0 0
        %652 = vmatprep.subr.bf16.mxu0 0
        %653 = vmatpush1.bf16.msra.mxu0 0
        %654 = vmatprep.subr.bf16.mxu0 0
        %655 = vmatpush1.bf16.msra.mxu0 0
        %656 = vmatprep.subr.bf16.mxu0 0
        %657 = vmatpush1.bf16.msra.mxu0 0
        %658 = vmatprep.mubr.bf16.mxu0 0
        %659 = vmatmul.mubr.bf16.gmra.mrb[0].mxu0 %v603
        %v660 = vpop.f32.mrb[0].mxu0
        %v661 = vadd.f32 %v364, %v660
        %v662 = vpop.f32.mrb[0].mxu0
        %v663 = vadd.f32 %v368, %v662
        %v664 = vpop.f32.mrb[0].mxu0
        %v665 = vadd.f32 %v364, %v664
        %v666 = vpop.f32.mrb[0].mxu0
        %v667 = vadd.f32 %v368, %v666
        %668 = vmatprep.mubr.bf16.mxu0 0
        %669 = vmatmul.mubr.bf16.gmra.mrb[0].mxu0 %v606
        %v670 = vpop.f32.mrb[0].mxu0
        %v671 = vadd.f32 %v364, %v670
        %v672 = vpop.f32.mrb[0].mxu0
        %v673 = vadd.f32 %v368, %v672
        %v674 = vpop.f32.mrb[0].mxu0
        %v675 = vadd.f32 %v364, %v674
        %v676 = vpop.f32.mrb[0].mxu0
        %v677 = vadd.f32 %v368, %v676
        %678 = vmatprep.mubr.bf16.mxu0 0
        %679 = vmatmul.mubr.bf16.gmra.mrb[0].mxu0 %v609
        %v680 = vpop.f32.mrb[0].mxu0
        %v681 = vadd.f32 %v364, %v680
        %v682 = vpop.f32.mrb[0].mxu0
        %v683 = vadd.f32 %v368, %v682
        %v684 = vpop.f32.mrb[0].mxu0
        %v685 = vadd.f32 %v364, %v684
        %v686 = vpop.f32.mrb[0].mxu0
        %v687 = vadd.f32 %v368, %v686
        %688 = vmatprep.mubr.bf16.mxu0 0
        %689 = vmatmul.mubr.bf16.gmra.mrb[0].mxu0 %v612
        %v690 = vpop.f32.mrb[0].mxu0
        %v691 = vadd.f32 %v364, %v690
        %v692 = vpop.f32.mrb[0].mxu0
        %v693 = vadd.f32 %v368, %v692
        %v694 = vpop.f32.mrb[0].mxu0
        %v695 = vadd.f32 %v364, %v694
        %v696 = vpop.f32.mrb[0].mxu0
        %v697 = vadd.f32 %v368, %v696
        %698 = vmatprep.mubr.bf16.mxu0 0
        %699 = vmatmul.mubr.bf16.gmra.mrb[0].mxu0 %v615
        %v700 = vpop.f32.mrb[0].mxu0
        %v701 = vadd.f32 %v364, %v700
        %v702 = vpop.f32.mrb[0].mxu0
        %v703 = vadd.f32 %v368, %v702
        %v704 = vpop.f32.mrb[0].mxu0
        %v705 = vadd.f32 %v364, %v704
        %v706 = vpop.f32.mrb[0].mxu0
        %v707 = vadd.f32 %v368, %v706
        %708 = vmatprep.mubr.bf16.mxu0 0
        %709 = vmatmul.mubr.bf16.gmra.mrb[0].mxu0 %v618
        %v710 = vpop.f32.mrb[0].mxu0
        %v711 = vadd.f32 %v364, %v710
        %v712 = vpop.f32.mrb[0].mxu0
        %v713 = vadd.f32 %v368, %v712
        %v714 = vpop.f32.mrb[0].mxu0
        %v715 = vadd.f32 %v364, %v714
        %v716 = vpop.f32.mrb[0].mxu0
        %v717 = vadd.f32 %v368, %v716
        %718 = vmatprep.mubr.bf16.mxu0 0
        %719 = vmatmul.mubr.bf16.gmra.mrb[0].mxu0 %v621
        %v720 = vpop.f32.mrb[0].mxu0
        %v721 = vadd.f32 %v364, %v720
        %v722 = vpop.f32.mrb[0].mxu0
        %v723 = vadd.f32 %v368, %v722
        %v724 = vpop.f32.mrb[0].mxu0
        %v725 = vadd.f32 %v364, %v724
        %v726 = vpop.f32.mrb[0].mxu0
        %v727 = vadd.f32 %v368, %v726
        %728 = vmatprep.mubr.bf16.mxu0 0
        %729 = vmatmul.mubr.bf16.gmra.mrb[0].mxu0 %v624
        %v730 = vpop.f32.mrb[0].mxu0
        %v731 = vadd.f32 %v364, %v730
        %v732 = vpop.f32.mrb[0].mxu0
        %v733 = vadd.f32 %v368, %v732
        %v734 = vpop.f32.mrb[0].mxu0
        %v735 = vadd.f32 %v364, %v734
        %v736 = vpop.f32.mrb[0].mxu0
        %v737 = vadd.f32 %v368, %v736
        %738 = vdwg.mxu0
        %739 = vmatprep.subr.bf16.mxu0 %v540
        %740 = vmatpush1.bf16.msra.mxu0 %v539
        %741 = vmatprep.subr.bf16.mxu0 %v548
        %742 = vmatpush1.bf16.msra.mxu0 %v547
        %743 = vmatprep.subr.bf16.mxu0 %v556
        %744 = vmatpush1.bf16.msra.mxu0 %v555
        %745 = vmatprep.subr.bf16.mxu0 %v564
        %746 = vmatpush1.bf16.msra.mxu0 %v563
        %747 = vmatprep.subr.bf16.mxu0 0
        %748 = vmatpush1.bf16.msra.mxu0 0
        %749 = vmatprep.subr.bf16.mxu0 0
        %750 = vmatpush1.bf16.msra.mxu0 0
        %751 = vmatprep.subr.bf16.mxu0 0
        %752 = vmatpush1.bf16.msra.mxu0 0
        %753 = vmatprep.subr.bf16.mxu0 0
        %754 = vmatpush1.bf16.msra.mxu0 0
        %755 = vmatprep.subr.bf16.mxu0 0
        %756 = vmatpush1.bf16.msra.mxu0 0
        %757 = vmatprep.subr.bf16.mxu0 0
        %758 = vmatpush1.bf16.msra.mxu0 0
        %759 = vmatprep.subr.bf16.mxu0 0
        %760 = vmatpush1.bf16.msra.mxu0 0
        %761 = vmatprep.subr.bf16.mxu0 0
        %762 = vmatpush1.bf16.msra.mxu0 0
        %763 = vmatprep.subr.bf16.mxu0 0
        %764 = vmatpush1.bf16.msra.mxu0 0
        %765 = vmatprep.subr.bf16.mxu0 0
        %766 = vmatpush1.bf16.msra.mxu0 0
        %767 = vmatprep.subr.bf16.mxu0 0
        %768 = vmatpush1.bf16.msra.mxu0 0
        %769 = vmatprep.subr.bf16.mxu0 0
        %770 = vmatpush1.bf16.msra.mxu0 0
        %771 = vmatprep.mubr.bf16.mxu0 0
        %772 = vmatmul.mubr.bf16.gmra.mrb[0].mxu0 %v603
        %v773 = vpop.f32.mrb[0].mxu0
        %v774 = vadd.f32 %v372, %v773
        %v775 = vpop.f32.mrb[0].mxu0
        %v776 = vadd.f32 %v376, %v775
        %v777 = vpop.f32.mrb[0].mxu0
        %v778 = vadd.f32 %v372, %v777
        %v779 = vpop.f32.mrb[0].mxu0
        %v780 = vadd.f32 %v376, %v779
        %781 = vmatprep.mubr.bf16.mxu0 0
        %782 = vmatmul.mubr.bf16.gmra.mrb[0].mxu0 %v606
        %v783 = vpop.f32.mrb[0].mxu0
        %v784 = vadd.f32 %v372, %v783
        %v785 = vpop.f32.mrb[0].mxu0
        %v786 = vadd.f32 %v376, %v785
        %v787 = vpop.f32.mrb[0].mxu0
        %v788 = vadd.f32 %v372, %v787
        %v789 = vpop.f32.mrb[0].mxu0
        %v790 = vadd.f32 %v376, %v789
        %791 = vmatprep.mubr.bf16.mxu0 0
        %792 = vmatmul.mubr.bf16.gmra.mrb[0].mxu0 %v609
        %v793 = vpop.f32.mrb[0].mxu0
        %v794 = vadd.f32 %v372, %v793
        %v795 = vpop.f32.mrb[0].mxu0
        %v796 = vadd.f32 %v376, %v795
        %v797 = vpop.f32.mrb[0].mxu0
        %v798 = vadd.f32 %v372, %v797
        %v799 = vpop.f32.mrb[0].mxu0
        %v800 = vadd.f32 %v376, %v799
        %801 = vmatprep.mubr.bf16.mxu0 0
        %802 = vmatmul.mubr.bf16.gmra.mrb[0].mxu0 %v612
        %v803 = vpop.f32.mrb[0].mxu0
        %v804 = vadd.f32 %v372, %v803
        %v805 = vpop.f32.mrb[0].mxu0
        %v806 = vadd.f32 %v376, %v805
        %v807 = vpop.f32.mrb[0].mxu0
        %v808 = vadd.f32 %v372, %v807
        %v809 = vpop.f32.mrb[0].mxu0
        %v810 = vadd.f32 %v376, %v809
        %811 = vmatprep.mubr.bf16.mxu0 0
        %812 = vmatmul.mubr.bf16.gmra.mrb[0].mxu0 %v615
        %v813 = vpop.f32.mrb[0].mxu0
        %v814 = vadd.f32 %v372, %v813
        %v815 = vpop.f32.mrb[0].mxu0
        %v816 = vadd.f32 %v376, %v815
        %v817 = vpop.f32.mrb[0].mxu0
        %v818 = vadd.f32 %v372, %v817
        %v819 = vpop.f32.mrb[0].mxu0
        %v820 = vadd.f32 %v376, %v819
        %821 = vmatprep.mubr.bf16.mxu0 0
        %822 = vmatmul.mubr.bf16.gmra.mrb[0].mxu0 %v618
        %v823 = vpop.f32.mrb[0].mxu0
        %v824 = vadd.f32 %v372, %v823
        %v825 = vpop.f32.mrb[0].mxu0
        %v826 = vadd.f32 %v376, %v825
        %v827 = vpop.f32.mrb[0].mxu0
        %v828 = vadd.f32 %v372, %v827
        %v829 = vpop.f32.mrb[0].mxu0
        %v830 = vadd.f32 %v376, %v829
        %831 = vmatprep.mubr.bf16.mxu0 0
        %832 = vmatmul.mubr.bf16.gmra.mrb[0].mxu0 %v621
        %v833 = vpop.f32.mrb[0].mxu0
        %v834 = vadd.f32 %v372, %v833
        %v835 = vpop.f32.mrb[0].mxu0
        %v836 = vadd.f32 %v376, %v835
        %v837 = vpop.f32.mrb[0].mxu0
        %v838 = vadd.f32 %v372, %v837
        %v839 = vpop.f32.mrb[0].mxu0
        %v840 = vadd.f32 %v376, %v839
        %841 = vmatprep.mubr.bf16.mxu0 0
        %842 = vmatmul.mubr.bf16.gmra.mrb[0].mxu0 %v624
        %v843 = vpop.f32.mrb[0].mxu0
        %v844 = vadd.f32 %v372, %v843
        %v845 = vpop.f32.mrb[0].mxu0
        %v846 = vadd.f32 %v376, %v845
        %v847 = vpop.f32.mrb[0].mxu0
        %v848 = vadd.f32 %v372, %v847
        %v849 = vpop.f32.mrb[0].mxu0
        %v850 = vadd.f32 %v376, %v849
        %851 = vdwg.mxu0
        %852 = vmatprep.subr.bf16.mxu0 %v542
        %853 = vmatpush1.bf16.msra.mxu0 %v541
        %854 = vmatprep.subr.bf16.mxu0 %v550
        %855 = vmatpush1.bf16.msra.mxu0 %v549
        %856 = vmatprep.subr.bf16.mxu0 %v558
        %857 = vmatpush1.bf16.msra.mxu0 %v557
        %858 = vmatprep.subr.bf16.mxu0 %v566
        %859 = vmatpush1.bf16.msra.mxu0 %v565
        %860 = vmatprep.subr.bf16.mxu0 0
        %861 = vmatpush1.bf16.msra.mxu0 0
        %862 = vmatprep.subr.bf16.mxu0 0
        %863 = vmatpush1.bf16.msra.mxu0 0
        %864 = vmatprep.subr.bf16.mxu0 0
        %865 = vmatpush1.bf16.msra.mxu0 0
        %866 = vmatprep.subr.bf16.mxu0 0
        %867 = vmatpush1.bf16.msra.mxu0 0
        %868 = vmatprep.subr.bf16.mxu0 0
        %869 = vmatpush1.bf16.msra.mxu0 0
        %870 = vmatprep.subr.bf16.mxu0 0
        %871 = vmatpush1.bf16.msra.mxu0 0
        %872 = vmatprep.subr.bf16.mxu0 0
        %873 = vmatpush1.bf16.msra.mxu0 0
        %874 = vmatprep.subr.bf16.mxu0 0
        %875 = vmatpush1.bf16.msra.mxu0 0
        %876 = vmatprep.subr.bf16.mxu0 0
        %877 = vmatpush1.bf16.msra.mxu0 0
        %878 = vmatprep.subr.bf16.mxu0 0
        %879 = vmatpush1.bf16.msra.mxu0 0
        %880 = vmatprep.subr.bf16.mxu0 0
        %881 = vmatpush1.bf16.msra.mxu0 0
        %882 = vmatprep.subr.bf16.mxu0 0
        %883 = vmatpush1.bf16.msra.mxu0 0
        %884 = vmatprep.mubr.bf16.mxu0 0
        %885 = vmatmul.mubr.bf16.gmra.mrb[0].mxu0 %v603
        %v886 = vpop.f32.mrb[0].mxu0
        %v887 = vadd.f32 %v380, %v886
        %v888 = vpop.f32.mrb[0].mxu0
        %v889 = vadd.f32 %v384, %v888
        %v890 = vpop.f32.mrb[0].mxu0
        %v891 = vadd.f32 %v380, %v890
        %v892 = vpop.f32.mrb[0].mxu0
        %v893 = vadd.f32 %v384, %v892
        %894 = vmatprep.mubr.bf16.mxu0 0
        %895 = vmatmul.mubr.bf16.gmra.mrb[0].mxu0 %v606
        %v896 = vpop.f32.mrb[0].mxu0
        %v897 = vadd.f32 %v380, %v896
        %v898 = vpop.f32.mrb[0].mxu0
        %v899 = vadd.f32 %v384, %v898
        %v900 = vpop.f32.mrb[0].mxu0
        %v901 = vadd.f32 %v380, %v900
        %v902 = vpop.f32.mrb[0].mxu0
        %v903 = vadd.f32 %v384, %v902
        %904 = vmatprep.mubr.bf16.mxu0 0
        %905 = vmatmul.mubr.bf16.gmra.mrb[0].mxu0 %v609
        %v906 = vpop.f32.mrb[0].mxu0
        %v907 = vadd.f32 %v380, %v906
        %v908 = vpop.f32.mrb[0].mxu0
        %v909 = vadd.f32 %v384, %v908
        %v910 = vpop.f32.mrb[0].mxu0
        %v911 = vadd.f32 %v380, %v910
        %v912 = vpop.f32.mrb[0].mxu0
        %v913 = vadd.f32 %v384, %v912
        %914 = vmatprep.mubr.bf16.mxu0 0
        %915 = vmatmul.mubr.bf16.gmra.mrb[0].mxu0 %v612
        %v916 = vpop.f32.mrb[0].mxu0
        %v917 = vadd.f32 %v380, %v916
        %v918 = vpop.f32.mrb[0].mxu0
        %v919 = vadd.f32 %v384, %v918
        %v920 = vpop.f32.mrb[0].mxu0
        %v921 = vadd.f32 %v380, %v920
        %v922 = vpop.f32.mrb[0].mxu0
        %v923 = vadd.f32 %v384, %v922
        %924 = vmatprep.mubr.bf16.mxu0 0
        %925 = vmatmul.mubr.bf16.gmra.mrb[0].mxu0 %v615
        %v926 = vpop.f32.mrb[0].mxu0
        %v927 = vadd.f32 %v380, %v926
        %v928 = vpop.f32.mrb[0].mxu0
        %v929 = vadd.f32 %v384, %v928
        %v930 = vpop.f32.mrb[0].mxu0
        %v931 = vadd.f32 %v380, %v930
        %v932 = vpop.f32.mrb[0].mxu0
        %v933 = vadd.f32 %v384, %v932
        %934 = vmatprep.mubr.bf16.mxu0 0
        %935 = vmatmul.mubr.bf16.gmra.mrb[0].mxu0 %v618
        %v936 = vpop.f32.mrb[0].mxu0
        %v937 = vadd.f32 %v380, %v936
        %v938 = vpop.f32.mrb[0].mxu0
        %v939 = vadd.f32 %v384, %v938
        %v940 = vpop.f32.mrb[0].mxu0
        %v941 = vadd.f32 %v380, %v940
        %v942 = vpop.f32.mrb[0].mxu0
        %v943 = vadd.f32 %v384, %v942
        %944 = vmatprep.mubr.bf16.mxu0 0
        %945 = vmatmul.mubr.bf16.gmra.mrb[0].mxu0 %v621
        %v946 = vpop.f32.mrb[0].mxu0
        %v947 = vadd.f32 %v380, %v946
        %v948 = vpop.f32.mrb[0].mxu0
        %v949 = vadd.f32 %v384, %v948
        %v950 = vpop.f32.mrb[0].mxu0
        %v951 = vadd.f32 %v380, %v950
        %v952 = vpop.f32.mrb[0].mxu0
        %v953 = vadd.f32 %v384, %v952
        %954 = vmatprep.mubr.bf16.mxu0 0
        %955 = vmatmul.mubr.bf16.gmra.mrb[0].mxu0 %v624
        %v956 = vpop.f32.mrb[0].mxu0
        %v957 = vadd.f32 %v380, %v956
        %v958 = vpop.f32.mrb[0].mxu0
        %v959 = vadd.f32 %v384, %v958
        %v960 = vpop.f32.mrb[0].mxu0
        %v961 = vadd.f32 %v380, %v960
        %v962 = vpop.f32.mrb[0].mxu0
        %v963 = vadd.f32 %v384, %v962
        %964 = vdwg.mxu0
        %965 = vmatprep.subr.bf16.mxu0 %v544
        %966 = vmatpush1.bf16.msra.mxu0 %v543
        %967 = vmatprep.subr.bf16.mxu0 %v552
        %968 = vmatpush1.bf16.msra.mxu0 %v551
        %969 = vmatprep.subr.bf16.mxu0 %v560
        %970 = vmatpush1.bf16.msra.mxu0 %v559
        %971 = vmatprep.subr.bf16.mxu0 %v568
        %972 = vmatpush1.bf16.msra.mxu0 %v567
        %973 = vmatprep.subr.bf16.mxu0 0
        %974 = vmatpush1.bf16.msra.mxu0 0
        %975 = vmatprep.subr.bf16.mxu0 0
        %976 = vmatpush1.bf16.msra.mxu0 0
        %977 = vmatprep.subr.bf16.mxu0 0
        %978 = vmatpush1.bf16.msra.mxu0 0
        %979 = vmatprep.subr.bf16.mxu0 0
        %980 = vmatpush1.bf16.msra.mxu0 0
        %981 = vmatprep.subr.bf16.mxu0 0
        %982 = vmatpush1.bf16.msra.mxu0 0
        %983 = vmatprep.subr.bf16.mxu0 0
        %984 = vmatpush1.bf16.msra.mxu0 0
        %985 = vmatprep.subr.bf16.mxu0 0
        %986 = vmatpush1.bf16.msra.mxu0 0
        %987 = vmatprep.subr.bf16.mxu0 0
        %988 = vmatpush1.bf16.msra.mxu0 0
        %989 = vmatprep.subr.bf16.mxu0 0
        %990 = vmatpush1.bf16.msra.mxu0 0
        %991 = vmatprep.subr.bf16.mxu0 0
        %992 = vmatpush1.bf16.msra.mxu0 0
        %993 = vmatprep.subr.bf16.mxu0 0
        %994 = vmatpush1.bf16.msra.mxu0 0
        %995 = vmatprep.subr.bf16.mxu0 0
        %996 = vmatpush1.bf16.msra.mxu0 0
        %997 = vmatprep.mubr.bf16.mxu0 0
        %998 = vmatmul.mubr.bf16.gmra.mrb[0].mxu0 %v603
        %v999 = vpop.f32.mrb[0].mxu0
        %v1000 = vadd.f32 %v388, %v999
        %v1001 = vpop.f32.mrb[0].mxu0
        %v1002 = vadd.f32 %v392, %v1001
        %v1003 = vpop.f32.mrb[0].mxu0
        %v1004 = vadd.f32 %v388, %v1003
        %v1005 = vpop.f32.mrb[0].mxu0
        %v1006 = vadd.f32 %v392, %v1005
        %1007 = vmatprep.mubr.bf16.mxu0 0
        %1008 = vmatmul.mubr.bf16.gmra.mrb[0].mxu0 %v606
        %v1009 = vpop.f32.mrb[0].mxu0
        %v1010 = vadd.f32 %v388, %v1009
        %v1011 = vpop.f32.mrb[0].mxu0
        %v1012 = vadd.f32 %v392, %v1011
        %v1013 = vpop.f32.mrb[0].mxu0
        %v1014 = vadd.f32 %v388, %v1013
        %v1015 = vpop.f32.mrb[0].mxu0
        %v1016 = vadd.f32 %v392, %v1015
        %1017 = vmatprep.mubr.bf16.mxu0 0
        %1018 = vmatmul.mubr.bf16.gmra.mrb[0].mxu0 %v609
        %v1019 = vpop.f32.mrb[0].mxu0
        %v1020 = vadd.f32 %v388, %v1019
        %v1021 = vpop.f32.mrb[0].mxu0
        %v1022 = vadd.f32 %v392, %v1021
        %v1023 = vpop.f32.mrb[0].mxu0
        %v1024 = vadd.f32 %v388, %v1023
        %v1025 = vpop.f32.mrb[0].mxu0
        %v1026 = vadd.f32 %v392, %v1025
        %1027 = vmatprep.mubr.bf16.mxu0 0
        %1028 = vmatmul.mubr.bf16.gmra.mrb[0].mxu0 %v612
        %v1029 = vpop.f32.mrb[0].mxu0
        %v1030 = vadd.f32 %v388, %v1029
        %v1031 = vpop.f32.mrb[0].mxu0
        %v1032 = vadd.f32 %v392, %v1031
        %v1033 = vpop.f32.mrb[0].mxu0
        %v1034 = vadd.f32 %v388, %v1033
        %v1035 = vpop.f32.mrb[0].mxu0
        %v1036 = vadd.f32 %v392, %v1035
        %1037 = vmatprep.mubr.bf16.mxu0 0
        %1038 = vmatmul.mubr.bf16.gmra.mrb[0].mxu0 %v615
        %v1039 = vpop.f32.mrb[0].mxu0
        %v1040 = vadd.f32 %v388, %v1039
        %v1041 = vpop.f32.mrb[0].mxu0
        %v1042 = vadd.f32 %v392, %v1041
        %v1043 = vpop.f32.mrb[0].mxu0
        %v1044 = vadd.f32 %v388, %v1043
        %v1045 = vpop.f32.mrb[0].mxu0
        %v1046 = vadd.f32 %v392, %v1045
        %1047 = vmatprep.mubr.bf16.mxu0 0
        %1048 = vmatmul.mubr.bf16.gmra.mrb[0].mxu0 %v618
        %v1049 = vpop.f32.mrb[0].mxu0
        %v1050 = vadd.f32 %v388, %v1049
        %v1051 = vpop.f32.mrb[0].mxu0
        %v1052 = vadd.f32 %v392, %v1051
        %v1053 = vpop.f32.mrb[0].mxu0
        %v1054 = vadd.f32 %v388, %v1053
        %v1055 = vpop.f32.mrb[0].mxu0
        %v1056 = vadd.f32 %v392, %v1055
        %1057 = vmatprep.mubr.bf16.mxu0 0
        %1058 = vmatmul.mubr.bf16.gmra.mrb[0].mxu0 %v621
        %v1059 = vpop.f32.mrb[0].mxu0
        %v1060 = vadd.f32 %v388, %v1059
        %v1061 = vpop.f32.mrb[0].mxu0
        %v1062 = vadd.f32 %v392, %v1061
        %v1063 = vpop.f32.mrb[0].mxu0
        %v1064 = vadd.f32 %v388, %v1063
        %v1065 = vpop.f32.mrb[0].mxu0
        %v1066 = vadd.f32 %v392, %v1065
        %1067 = vmatprep.mubr.bf16.mxu0 0
        %1068 = vmatmul.mubr.bf16.gmra.mrb[0].mxu0 %v624
        %v1069 = vpop.f32.mrb[0].mxu0
        %v1070 = vadd.f32 %v388, %v1069
        %v1071 = vpop.f32.mrb[0].mxu0
        %v1072 = vadd.f32 %v392, %v1071
        %v1073 = vpop.f32.mrb[0].mxu0
        %v1074 = vadd.f32 %v388, %v1073
        %v1075 = vpop.f32.mrb[0].mxu0
        %v1076 = vadd.f32 %v392, %v1075
        %1077 = vdwg.mxu0
        %v1078 = vpack.c.bf16 %v665, %v661
        %v1079 = vpack.c.bf16 %v667, %v663
        %v1080 = vpack.c.bf16 %v778, %v774
        %v1081 = vpack.c.bf16 %v780, %v776
        %v1082 = vpack.c.bf16 %v891, %v887
        %v1083 = vpack.c.bf16 %v893, %v889
        %v1084 = vpack.c.bf16 %v1004, %v1000
        %v1085 = vpack.c.bf16 %v1006, %v1002
        %v1086 = vpack.c.bf16 %v675, %v671
        %v1087 = vpack.c.bf16 %v677, %v673
        %v1088 = vpack.c.bf16 %v788, %v784
        %v1089 = vpack.c.bf16 %v790, %v786
        %v1090 = vpack.c.bf16 %v901, %v897
        %v1091 = vpack.c.bf16 %v903, %v899
        %v1092 = vpack.c.bf16 %v1014, %v1010
        %v1093 = vpack.c.bf16 %v1016, %v1012
        %v1094 = vpack.c.bf16 %v685, %v681
        %v1095 = vpack.c.bf16 %v687, %v683
        %v1096 = vpack.c.bf16 %v798, %v794
        %v1097 = vpack.c.bf16 %v800, %v796
        %v1098 = vpack.c.bf16 %v911, %v907
        %v1099 = vpack.c.bf16 %v913, %v909
        %v1100 = vpack.c.bf16 %v1024, %v1020
        %v1101 = vpack.c.bf16 %v1026, %v1022
        %v1102 = vpack.c.bf16 %v695, %v691
        %v1103 = vpack.c.bf16 %v697, %v693
        %v1104 = vpack.c.bf16 %v808, %v804
        %v1105 = vpack.c.bf16 %v810, %v806
        %v1106 = vpack.c.bf16 %v921, %v917
        %v1107 = vpack.c.bf16 %v923, %v919
        %v1108 = vpack.c.bf16 %v1034, %v1030
        %v1109 = vpack.c.bf16 %v1036, %v1032
        %v1110 = vpack.c.bf16 %v705, %v701
        %v1111 = vpack.c.bf16 %v707, %v703
        %v1112 = vpack.c.bf16 %v818, %v814
        %v1113 = vpack.c.bf16 %v820, %v816
        %v1114 = vpack.c.bf16 %v931, %v927
        %v1115 = vpack.c.bf16 %v933, %v929
        %v1116 = vpack.c.bf16 %v1044, %v1040
        %v1117 = vpack.c.bf16 %v1046, %v1042
        %v1118 = vpack.c.bf16 %v715, %v711
        %v1119 = vpack.c.bf16 %v717, %v713
        %v1120 = vpack.c.bf16 %v828, %v824
        %v1121 = vpack.c.bf16 %v830, %v826
        %v1122 = vpack.c.bf16 %v941, %v937
        %v1123 = vpack.c.bf16 %v943, %v939
        %v1124 = vpack.c.bf16 %v1054, %v1050
        %v1125 = vpack.c.bf16 %v1056, %v1052
        %v1126 = vpack.c.bf16 %v725, %v721
        %v1127 = vpack.c.bf16 %v727, %v723
        %v1128 = vpack.c.bf16 %v838, %v834
        %v1129 = vpack.c.bf16 %v840, %v836
        %v1130 = vpack.c.bf16 %v951, %v947
        %v1131 = vpack.c.bf16 %v953, %v949
        %v1132 = vpack.c.bf16 %v1064, %v1060
        %v1133 = vpack.c.bf16 %v1066, %v1062
        %v1134 = vpack.c.bf16 %v735, %v731
        %v1135 = vpack.c.bf16 %v737, %v733
        %v1136 = vpack.c.bf16 %v848, %v844
        %v1137 = vpack.c.bf16 %v850, %v846
        %v1138 = vpack.c.bf16 %v961, %v957
        %v1139 = vpack.c.bf16 %v963, %v959
        %v1140 = vpack.c.bf16 %v1074, %v1070
        %v1141 = vpack.c.bf16 %v1076, %v1072
        %v1142 = vld [vmem:[#allocation6] sm:$0xf]
        %v1143 = vld [vmem:[#allocation6 + $0x4] sm:$0xf]
        %v1144 = vld [vmem:[#allocation6 + $0x8] sm:$0xf]
        %v1145 = vld [vmem:[#allocation6 + $0xc] sm:$0xf]
        %v1146 = vld [vmem:[#allocation6 + $0x10] sm:$0xf]
        %v1147 = vld [vmem:[#allocation6 + $0x14] sm:$0xf]
        %v1148 = vld [vmem:[#allocation6 + $0x18] sm:$0xf]
        %v1149 = vld [vmem:[#allocation6 + $0x1c] sm:$0xf]
        %v1150 = vld [vmem:[#allocation6 + $0x20] sm:$0xf]
        %v1151 = vld [vmem:[#allocation6 + $0x24] sm:$0xf]
        %v1152 = vld [vmem:[#allocation6 + $0x28] sm:$0xf]
        %v1153 = vld [vmem:[#allocation6 + $0x2c] sm:$0xf]
        %v1154 = vld [vmem:[#allocation6 + $0x30] sm:$0xf]
        %v1155 = vld [vmem:[#allocation6 + $0x34] sm:$0xf]
        %v1156 = vld [vmem:[#allocation6 + $0x38] sm:$0xf]
        %v1157 = vld [vmem:[#allocation6 + $0x3c] sm:$0xf]
        %v1158 = vld [vmem:[#allocation6 + $0x40] sm:$0xf]
        %v1159 = vld [vmem:[#allocation6 + $0x44] sm:$0xf]
        %v1160 = vld [vmem:[#allocation6 + $0x48] sm:$0xf]
        %v1161 = vld [vmem:[#allocation6 + $0x4c] sm:$0xf]
        %v1162 = vld [vmem:[#allocation6 + $0x50] sm:$0xf]
        %v1163 = vld [vmem:[#allocation6 + $0x54] sm:$0xf]
        %v1164 = vld [vmem:[#allocation6 + $0x58] sm:$0xf]
        %v1165 = vld [vmem:[#allocation6 + $0x5c] sm:$0xf]
        %v1166 = vld [vmem:[#allocation6 + $0x60] sm:$0xf]
        %v1167 = vld [vmem:[#allocation6 + $0x64] sm:$0xf]
        %v1168 = vld [vmem:[#allocation6 + $0x68] sm:$0xf]
        %v1169 = vld [vmem:[#allocation6 + $0x6c] sm:$0xf]
        %v1170 = vld [vmem:[#allocation6 + $0x70] sm:$0xf]
        %v1171 = vld [vmem:[#allocation6 + $0x74] sm:$0xf]
        %v1172 = vld [vmem:[#allocation6 + $0x78] sm:$0xf]
        %v1173 = vld [vmem:[#allocation6 + $0x7c] sm:$0xf]
        %v1174 = vld [vmem:[#allocation6 + $0x80] sm:$0xf]
        %v1175 = vld [vmem:[#allocation6 + $0x84] sm:$0xf]
        %v1176 = vld [vmem:[#allocation6 + $0x88] sm:$0xf]
        %v1177 = vld [vmem:[#allocation6 + $0x8c] sm:$0xf]
        %v1178 = vld [vmem:[#allocation6 + $0x90] sm:$0xf]
        %v1179 = vld [vmem:[#allocation6 + $0x94] sm:$0xf]
        %v1180 = vld [vmem:[#allocation6 + $0x98] sm:$0xf]
        %v1181 = vld [vmem:[#allocation6 + $0x9c] sm:$0xf]
        %v1182 = vld [vmem:[#allocation6 + $0xa0] sm:$0xf]
        %v1183 = vld [vmem:[#allocation6 + $0xa4] sm:$0xf]
        %v1184 = vld [vmem:[#allocation6 + $0xa8] sm:$0xf]
        %v1185 = vld [vmem:[#allocation6 + $0xac] sm:$0xf]
        %v1186 = vld [vmem:[#allocation6 + $0xb0] sm:$0xf]
        %v1187 = vld [vmem:[#allocation6 + $0xb4] sm:$0xf]
        %v1188 = vld [vmem:[#allocation6 + $0xb8] sm:$0xf]
        %v1189 = vld [vmem:[#allocation6 + $0xbc] sm:$0xf]
        %v1190 = vld [vmem:[#allocation6 + $0xc0] sm:$0xf]
        %v1191 = vld [vmem:[#allocation6 + $0xc4] sm:$0xf]
        %v1192 = vld [vmem:[#allocation6 + $0xc8] sm:$0xf]
        %v1193 = vld [vmem:[#allocation6 + $0xcc] sm:$0xf]
        %v1194 = vld [vmem:[#allocation6 + $0xd0] sm:$0xf]
        %v1195 = vld [vmem:[#allocation6 + $0xd4] sm:$0xf]
        %v1196 = vld [vmem:[#allocation6 + $0xd8] sm:$0xf]
        %v1197 = vld [vmem:[#allocation6 + $0xdc] sm:$0xf]
        %v1198 = vld [vmem:[#allocation6 + $0xe0] sm:$0xf]
        %v1199 = vld [vmem:[#allocation6 + $0xe4] sm:$0xf]
        %v1200 = vld [vmem:[#allocation6 + $0xe8] sm:$0xf]
        %v1201 = vld [vmem:[#allocation6 + $0xec] sm:$0xf]
        %v1202 = vld [vmem:[#allocation6 + $0xf0] sm:$0xf]
        %v1203 = vld [vmem:[#allocation6 + $0xf4] sm:$0xf]
        %v1204 = vld [vmem:[#allocation6 + $0xf8] sm:$0xf]
        %v1205 = vld [vmem:[#allocation6 + $0xfc] sm:$0xf]
        %v1206 = vld [vmem:[#allocation6 + $0x100] sm:$0xf]
        %v1207 = vld [vmem:[#allocation6 + $0x104] sm:$0xf]
        %v1208 = vld [vmem:[#allocation6 + $0x108] sm:$0xf]
        %v1209 = vld [vmem:[#allocation6 + $0x10c] sm:$0xf]
        %v1210 = vld [vmem:[#allocation6 + $0x110] sm:$0xf]
        %v1211 = vld [vmem:[#allocation6 + $0x114] sm:$0xf]
        %v1212 = vld [vmem:[#allocation6 + $0x118] sm:$0xf]
        %v1213 = vld [vmem:[#allocation6 + $0x11c] sm:$0xf]
        %v1214 = vld [vmem:[#allocation6 + $0x120] sm:$0xf]
        %v1215 = vld [vmem:[#allocation6 + $0x124] sm:$0xf]
        %v1216 = vld [vmem:[#allocation6 + $0x128] sm:$0xf]
        %v1217 = vld [vmem:[#allocation6 + $0x12c] sm:$0xf]
        %v1218 = vld [vmem:[#allocation6 + $0x130] sm:$0xf]
        %v1219 = vld [vmem:[#allocation6 + $0x134] sm:$0xf]
        %v1220 = vld [vmem:[#allocation6 + $0x138] sm:$0xf]
        %v1221 = vld [vmem:[#allocation6 + $0x13c] sm:$0xf]
        %v1222 = vld [vmem:[#allocation6 + $0x140] sm:$0xf]
        %v1223 = vld [vmem:[#allocation6 + $0x144] sm:$0xf]
        %v1224 = vld [vmem:[#allocation6 + $0x148] sm:$0xf]
        %v1225 = vld [vmem:[#allocation6 + $0x14c] sm:$0xf]
        %v1226 = vld [vmem:[#allocation6 + $0x150] sm:$0xf]
        %v1227 = vld [vmem:[#allocation6 + $0x154] sm:$0xf]
        %v1228 = vld [vmem:[#allocation6 + $0x158] sm:$0xf]
        %v1229 = vld [vmem:[#allocation6 + $0x15c] sm:$0xf]
        %v1230 = vld [vmem:[#allocation6 + $0x160] sm:$0xf]
        %v1231 = vld [vmem:[#allocation6 + $0x164] sm:$0xf]
        %v1232 = vld [vmem:[#allocation6 + $0x168] sm:$0xf]
        %v1233 = vld [vmem:[#allocation6 + $0x16c] sm:$0xf]
        %v1234 = vld [vmem:[#allocation6 + $0x170] sm:$0xf]
        %v1235 = vld [vmem:[#allocation6 + $0x174] sm:$0xf]
        %v1236 = vld [vmem:[#allocation6 + $0x178] sm:$0xf]
        %v1237 = vld [vmem:[#allocation6 + $0x17c] sm:$0xf]
        %v1238 = vld [vmem:[#allocation6 + $0x180] sm:$0xf]
        %v1239 = vld [vmem:[#allocation6 + $0x184] sm:$0xf]
        %v1240 = vld [vmem:[#allocation6 + $0x188] sm:$0xf]
        %v1241 = vld [vmem:[#allocation6 + $0x18c] sm:$0xf]
        %v1242 = vld [vmem:[#allocation6 + $0x190] sm:$0xf]
        %v1243 = vld [vmem:[#allocation6 + $0x194] sm:$0xf]
        %v1244 = vld [vmem:[#allocation6 + $0x198] sm:$0xf]
        %v1245 = vld [vmem:[#allocation6 + $0x19c] sm:$0xf]
        %v1246 = vld [vmem:[#allocation6 + $0x1a0] sm:$0xf]
        %v1247 = vld [vmem:[#allocation6 + $0x1a4] sm:$0xf]
        %v1248 = vld [vmem:[#allocation6 + $0x1a8] sm:$0xf]
        %v1249 = vld [vmem:[#allocation6 + $0x1ac] sm:$0xf]
        %v1250 = vld [vmem:[#allocation6 + $0x1b0] sm:$0xf]
        %v1251 = vld [vmem:[#allocation6 + $0x1b4] sm:$0xf]
        %v1252 = vld [vmem:[#allocation6 + $0x1b8] sm:$0xf]
        %v1253 = vld [vmem:[#allocation6 + $0x1bc] sm:$0xf]
        %v1254 = vld [vmem:[#allocation6 + $0x1c0] sm:$0xf]
        %v1255 = vld [vmem:[#allocation6 + $0x1c4] sm:$0xf]
        %v1256 = vld [vmem:[#allocation6 + $0x1c8] sm:$0xf]
        %v1257 = vld [vmem:[#allocation6 + $0x1cc] sm:$0xf]
        %v1258 = vld [vmem:[#allocation6 + $0x1d0] sm:$0xf]
        %v1259 = vld [vmem:[#allocation6 + $0x1d4] sm:$0xf]
        %v1260 = vld [vmem:[#allocation6 + $0x1d8] sm:$0xf]
        %v1261 = vld [vmem:[#allocation6 + $0x1dc] sm:$0xf]
        %v1262 = vld [vmem:[#allocation6 + $0x1e0] sm:$0xf]
        %v1263 = vld [vmem:[#allocation6 + $0x1e4] sm:$0xf]
        %v1264 = vld [vmem:[#allocation6 + $0x1e8] sm:$0xf]
        %v1265 = vld [vmem:[#allocation6 + $0x1ec] sm:$0xf]
        %v1266 = vld [vmem:[#allocation6 + $0x1f0] sm:$0xf]
        %v1267 = vld [vmem:[#allocation6 + $0x1f4] sm:$0xf]
        %v1268 = vld [vmem:[#allocation6 + $0x1f8] sm:$0xf]
        %v1269 = vld [vmem:[#allocation6 + $0x1fc] sm:$0xf]
        %v1270 = vld [vmem:[%s4] sm:$0x1]
        %v1272 = vlaneseq
        %v1273 = vshrl.u32 %v1272, 7
        %v1274 = vsub.s32 0, %v1273
        %v1275 = vrot.slane %v1270, %v1274
        %v1405 = vunpack.c.l.b16 %v1142
        %v1406 = vunpack.c.l.b16 %v1143
        %v1407 = vunpack.c.l.b16 %v1144
        %v1408 = vunpack.c.l.b16 %v1145
        %v1409 = vunpack.c.l.b16 %v1146
        %v1410 = vunpack.c.l.b16 %v1147
        %v1411 = vunpack.c.l.b16 %v1148
        %v1412 = vunpack.c.l.b16 %v1149
        %v1413 = vunpack.c.l.b16 %v1150
        %v1414 = vunpack.c.l.b16 %v1151
        %v1415 = vunpack.c.l.b16 %v1152
        %v1416 = vunpack.c.l.b16 %v1153
        %v1417 = vunpack.c.l.b16 %v1154
        %v1418 = vunpack.c.l.b16 %v1155
        %v1419 = vunpack.c.l.b16 %v1156
        %v1420 = vunpack.c.l.b16 %v1157
        %v1421 = vunpack.c.l.b16 %v1158
        %v1422 = vunpack.c.l.b16 %v1159
        %v1423 = vunpack.c.l.b16 %v1160
        %v1424 = vunpack.c.l.b16 %v1161
        %v1425 = vunpack.c.l.b16 %v1162
        %v1426 = vunpack.c.l.b16 %v1163
        %v1427 = vunpack.c.l.b16 %v1164
        %v1428 = vunpack.c.l.b16 %v1165
        %v1429 = vunpack.c.l.b16 %v1166
        %v1430 = vunpack.c.l.b16 %v1167
        %v1431 = vunpack.c.l.b16 %v1168
        %v1432 = vunpack.c.l.b16 %v1169
        %v1433 = vunpack.c.l.b16 %v1170
        %v1434 = vunpack.c.l.b16 %v1171
        %v1435 = vunpack.c.l.b16 %v1172
        %v1436 = vunpack.c.l.b16 %v1173
        %v1437 = vunpack.c.l.b16 %v1174
        %v1438 = vunpack.c.l.b16 %v1175
        %v1439 = vunpack.c.l.b16 %v1176
        %v1440 = vunpack.c.l.b16 %v1177
        %v1441 = vunpack.c.l.b16 %v1178
        %v1442 = vunpack.c.l.b16 %v1179
        %v1443 = vunpack.c.l.b16 %v1180
        %v1444 = vunpack.c.l.b16 %v1181
        %v1445 = vunpack.c.l.b16 %v1182
        %v1446 = vunpack.c.l.b16 %v1183
        %v1447 = vunpack.c.l.b16 %v1184
        %v1448 = vunpack.c.l.b16 %v1185
        %v1449 = vunpack.c.l.b16 %v1186
        %v1450 = vunpack.c.l.b16 %v1187
        %v1451 = vunpack.c.l.b16 %v1188
        %v1452 = vunpack.c.l.b16 %v1189
        %v1453 = vunpack.c.l.b16 %v1190
        %v1454 = vunpack.c.l.b16 %v1191
        %v1455 = vunpack.c.l.b16 %v1192
        %v1456 = vunpack.c.l.b16 %v1193
        %v1457 = vunpack.c.l.b16 %v1194
        %v1458 = vunpack.c.l.b16 %v1195
        %v1459 = vunpack.c.l.b16 %v1196
        %v1460 = vunpack.c.l.b16 %v1197
        %v1461 = vunpack.c.l.b16 %v1198
        %v1462 = vunpack.c.l.b16 %v1199
        %v1463 = vunpack.c.l.b16 %v1200
        %v1464 = vunpack.c.l.b16 %v1201
        %v1465 = vunpack.c.l.b16 %v1202
        %v1466 = vunpack.c.l.b16 %v1203
        %v1467 = vunpack.c.l.b16 %v1204
        %v1468 = vunpack.c.l.b16 %v1205
        %v1469 = vunpack.c.l.b16 %v1206
        %v1470 = vunpack.c.l.b16 %v1207
        %v1471 = vunpack.c.l.b16 %v1208
        %v1472 = vunpack.c.l.b16 %v1209
        %v1473 = vunpack.c.l.b16 %v1210
        %v1474 = vunpack.c.l.b16 %v1211
        %v1475 = vunpack.c.l.b16 %v1212
        %v1476 = vunpack.c.l.b16 %v1213
        %v1477 = vunpack.c.l.b16 %v1214
        %v1478 = vunpack.c.l.b16 %v1215
        %v1479 = vunpack.c.l.b16 %v1216
        %v1480 = vunpack.c.l.b16 %v1217
        %v1481 = vunpack.c.l.b16 %v1218
        %v1482 = vunpack.c.l.b16 %v1219
        %v1483 = vunpack.c.l.b16 %v1220
        %v1484 = vunpack.c.l.b16 %v1221
        %v1485 = vunpack.c.l.b16 %v1222
        %v1486 = vunpack.c.l.b16 %v1223
        %v1487 = vunpack.c.l.b16 %v1224
        %v1488 = vunpack.c.l.b16 %v1225
        %v1489 = vunpack.c.l.b16 %v1226
        %v1490 = vunpack.c.l.b16 %v1227
        %v1491 = vunpack.c.l.b16 %v1228
        %v1492 = vunpack.c.l.b16 %v1229
        %v1493 = vunpack.c.l.b16 %v1230
        %v1494 = vunpack.c.l.b16 %v1231
        %v1495 = vunpack.c.l.b16 %v1232
        %v1496 = vunpack.c.l.b16 %v1233
        %v1497 = vunpack.c.l.b16 %v1234
        %v1498 = vunpack.c.l.b16 %v1235
        %v1499 = vunpack.c.l.b16 %v1236
        %v1500 = vunpack.c.l.b16 %v1237
        %v1501 = vunpack.c.l.b16 %v1238
        %v1502 = vunpack.c.l.b16 %v1239
        %v1503 = vunpack.c.l.b16 %v1240
        %v1504 = vunpack.c.l.b16 %v1241
        %v1505 = vunpack.c.l.b16 %v1242
        %v1506 = vunpack.c.l.b16 %v1243
        %v1507 = vunpack.c.l.b16 %v1244
        %v1508 = vunpack.c.l.b16 %v1245
        %v1509 = vunpack.c.l.b16 %v1246
        %v1510 = vunpack.c.l.b16 %v1247
        %v1511 = vunpack.c.l.b16 %v1248
        %v1512 = vunpack.c.l.b16 %v1249
        %v1513 = vunpack.c.l.b16 %v1250
        %v1514 = vunpack.c.l.b16 %v1251
        %v1515 = vunpack.c.l.b16 %v1252
        %v1516 = vunpack.c.l.b16 %v1253
        %v1517 = vunpack.c.l.b16 %v1254
        %v1518 = vunpack.c.l.b16 %v1255
        %v1519 = vunpack.c.l.b16 %v1256
        %v1520 = vunpack.c.l.b16 %v1257
        %v1521 = vunpack.c.l.b16 %v1258
        %v1522 = vunpack.c.l.b16 %v1259
        %v1523 = vunpack.c.l.b16 %v1260
        %v1524 = vunpack.c.l.b16 %v1261
        %v1525 = vunpack.c.l.b16 %v1262
        %v1526 = vunpack.c.l.b16 %v1263
        %v1527 = vunpack.c.l.b16 %v1264
        %v1528 = vunpack.c.l.b16 %v1265
        %v1529 = vunpack.c.l.b16 %v1266
        %v1530 = vunpack.c.l.b16 %v1267
        %v1531 = vunpack.c.l.b16 %v1268
        %v1532 = vunpack.c.l.b16 %v1269
        %v1533 = vpack.c.b16 %v1406, %v1405
        %v1534 = vpack.c.b16 %v1408, %v1407
        %v1535 = vpack.c.b16 %v1410, %v1409
        %v1536 = vpack.c.b16 %v1412, %v1411
        %v1537 = vpack.c.b16 %v1414, %v1413
        %v1538 = vpack.c.b16 %v1416, %v1415
        %v1539 = vpack.c.b16 %v1418, %v1417
        %v1540 = vpack.c.b16 %v1420, %v1419
        %v1541 = vpack.c.b16 %v1422, %v1421
        %v1542 = vpack.c.b16 %v1424, %v1423
        %v1543 = vpack.c.b16 %v1426, %v1425
        %v1544 = vpack.c.b16 %v1428, %v1427
        %v1545 = vpack.c.b16 %v1430, %v1429
        %v1546 = vpack.c.b16 %v1432, %v1431
        %v1547 = vpack.c.b16 %v1434, %v1433
        %v1548 = vpack.c.b16 %v1436, %v1435
        %v1549 = vpack.c.b16 %v1438, %v1437
        %v1550 = vpack.c.b16 %v1440, %v1439
        %v1551 = vpack.c.b16 %v1442, %v1441
        %v1552 = vpack.c.b16 %v1444, %v1443
        %v1553 = vpack.c.b16 %v1446, %v1445
        %v1554 = vpack.c.b16 %v1448, %v1447
        %v1555 = vpack.c.b16 %v1450, %v1449
        %v1556 = vpack.c.b16 %v1452, %v1451
        %v1557 = vpack.c.b16 %v1454, %v1453
        %v1558 = vpack.c.b16 %v1456, %v1455
        %v1559 = vpack.c.b16 %v1458, %v1457
        %v1560 = vpack.c.b16 %v1460, %v1459
        %v1561 = vpack.c.b16 %v1462, %v1461
        %v1562 = vpack.c.b16 %v1464, %v1463
        %v1563 = vpack.c.b16 %v1466, %v1465
        %v1564 = vpack.c.b16 %v1468, %v1467
        %v1565 = vpack.c.b16 %v1470, %v1469
        %v1566 = vpack.c.b16 %v1472, %v1471
        %v1567 = vpack.c.b16 %v1474, %v1473
        %v1568 = vpack.c.b16 %v1476, %v1475
        %v1569 = vpack.c.b16 %v1478, %v1477
        %v1570 = vpack.c.b16 %v1480, %v1479
        %v1571 = vpack.c.b16 %v1482, %v1481
        %v1572 = vpack.c.b16 %v1484, %v1483
        %v1573 = vpack.c.b16 %v1486, %v1485
        %v1574 = vpack.c.b16 %v1488, %v1487
        %v1575 = vpack.c.b16 %v1490, %v1489
        %v1576 = vpack.c.b16 %v1492, %v1491
        %v1577 = vpack.c.b16 %v1494, %v1493
        %v1578 = vpack.c.b16 %v1496, %v1495
        %v1579 = vpack.c.b16 %v1498, %v1497
        %v1580 = vpack.c.b16 %v1500, %v1499
        %v1581 = vpack.c.b16 %v1502, %v1501
        %v1582 = vpack.c.b16 %v1504, %v1503
        %v1583 = vpack.c.b16 %v1506, %v1505
        %v1584 = vpack.c.b16 %v1508, %v1507
        %v1585 = vpack.c.b16 %v1510, %v1509
        %v1586 = vpack.c.b16 %v1512, %v1511
        %v1587 = vpack.c.b16 %v1514, %v1513
        %v1588 = vpack.c.b16 %v1516, %v1515
        %v1589 = vpack.c.b16 %v1518, %v1517
        %v1590 = vpack.c.b16 %v1520, %v1519
        %v1591 = vpack.c.b16 %v1522, %v1521
        %v1592 = vpack.c.b16 %v1524, %v1523
        %v1593 = vpack.c.b16 %v1526, %v1525
        %v1594 = vpack.c.b16 %v1528, %v1527
        %v1595 = vpack.c.b16 %v1530, %v1529
        %v1596 = vpack.c.b16 %v1532, %v1531
        %1661 = vmatprep.subr.bf16.mxu0 0
        %1662 = vmatpush1.bf16.msra.mxu0 %v1533
        %1663 = vmatprep.subr.bf16.mxu0 0
        %1664 = vmatpush1.bf16.msra.mxu0 %v1534
        %1665 = vmatprep.subr.bf16.mxu0 0
        %1666 = vmatpush1.bf16.msra.mxu0 %v1535
        %1667 = vmatprep.subr.bf16.mxu0 0
        %1668 = vmatpush1.bf16.msra.mxu0 %v1536
        %1669 = vmatprep.subr.bf16.mxu0 0
        %1670 = vmatpush1.bf16.msra.mxu0 %v1537
        %1671 = vmatprep.subr.bf16.mxu0 0
        %1672 = vmatpush1.bf16.msra.mxu0 %v1538
        %1673 = vmatprep.subr.bf16.mxu0 0
        %1674 = vmatpush1.bf16.msra.mxu0 %v1539
        %1675 = vmatprep.subr.bf16.mxu0 0
        %1676 = vmatpush1.bf16.msra.mxu0 %v1540
        %1677 = vmatprep.subr.bf16.mxu0 0
        %1678 = vmatpush1.bf16.msra.mxu0 %v1541
        %1679 = vmatprep.subr.bf16.mxu0 0
        %1680 = vmatpush1.bf16.msra.mxu0 %v1542
        %1681 = vmatprep.subr.bf16.mxu0 0
        %1682 = vmatpush1.bf16.msra.mxu0 %v1543
        %1683 = vmatprep.subr.bf16.mxu0 0
        %1684 = vmatpush1.bf16.msra.mxu0 %v1544
        %1685 = vmatprep.subr.bf16.mxu0 0
        %1686 = vmatpush1.bf16.msra.mxu0 %v1545
        %1687 = vmatprep.subr.bf16.mxu0 0
        %1688 = vmatpush1.bf16.msra.mxu0 %v1546
        %1689 = vmatprep.subr.bf16.mxu0 0
        %1690 = vmatpush1.bf16.msra.mxu0 %v1547
        %1691 = vmatprep.subr.bf16.mxu0 0
        %1692 = vmatpush1.bf16.msra.mxu0 %v1548
        %1693 = vmatprep.mubr.bf16.mxu0 %v1079
        %1694 = vmatmul.mubr.bf16.gmra.mrb[0].mxu0 %v1078
        %v1695 = vpop.f32.mrb[0].mxu0
        %v1696 = vadd.f32 %v1275, %v1695
        %v1697 = vpop.f32.mrb[0].mxu0
        %v1698 = vpop.f32.mrb[0].mxu0
        %v1699 = vadd.f32 %v1275, %v1698
        %v1700 = vpop.f32.mrb[0].mxu0
        %1701 = vmatprep.mubr.bf16.mxu0 %v1087
        %1702 = vmatmul.mubr.bf16.gmra.mrb[0].mxu0 %v1086
        %v1703 = vpop.f32.mrb[0].mxu0
        %v1704 = vadd.f32 %v1275, %v1703
        %v1705 = vpop.f32.mrb[0].mxu0
        %v1706 = vpop.f32.mrb[0].mxu0
        %v1707 = vadd.f32 %v1275, %v1706
        %v1708 = vpop.f32.mrb[0].mxu0
        %1709 = vmatprep.mubr.bf16.mxu0 %v1095
        %1710 = vmatmul.mubr.bf16.gmra.mrb[0].mxu0 %v1094
        %v1711 = vpop.f32.mrb[0].mxu0
        %v1712 = vadd.f32 %v1275, %v1711
        %v1713 = vpop.f32.mrb[0].mxu0
        %v1714 = vpop.f32.mrb[0].mxu0
        %v1715 = vadd.f32 %v1275, %v1714
        %v1716 = vpop.f32.mrb[0].mxu0
        %1717 = vmatprep.mubr.bf16.mxu0 %v1103
        %1718 = vmatmul.mubr.bf16.gmra.mrb[0].mxu0 %v1102
        %v1719 = vpop.f32.mrb[0].mxu0
        %v1720 = vadd.f32 %v1275, %v1719
        %v1721 = vpop.f32.mrb[0].mxu0
        %v1722 = vpop.f32.mrb[0].mxu0
        %v1723 = vadd.f32 %v1275, %v1722
        %v1724 = vpop.f32.mrb[0].mxu0
        %1725 = vmatprep.mubr.bf16.mxu0 %v1111
        %1726 = vmatmul.mubr.bf16.gmra.mrb[0].mxu0 %v1110
        %v1727 = vpop.f32.mrb[0].mxu0
        %v1728 = vadd.f32 %v1275, %v1727
        %v1729 = vpop.f32.mrb[0].mxu0
        %v1730 = vpop.f32.mrb[0].mxu0
        %v1731 = vadd.f32 %v1275, %v1730
        %v1732 = vpop.f32.mrb[0].mxu0
        %1733 = vmatprep.mubr.bf16.mxu0 %v1119
        %1734 = vmatmul.mubr.bf16.gmra.mrb[0].mxu0 %v1118
        %v1735 = vpop.f32.mrb[0].mxu0
        %v1736 = vadd.f32 %v1275, %v1735
        %v1737 = vpop.f32.mrb[0].mxu0
        %v1738 = vpop.f32.mrb[0].mxu0
        %v1739 = vadd.f32 %v1275, %v1738
        %v1740 = vpop.f32.mrb[0].mxu0
        %1741 = vmatprep.mubr.bf16.mxu0 %v1127
        %1742 = vmatmul.mubr.bf16.gmra.mrb[0].mxu0 %v1126
        %v1743 = vpop.f32.mrb[0].mxu0
        %v1744 = vadd.f32 %v1275, %v1743
        %v1745 = vpop.f32.mrb[0].mxu0
        %v1746 = vpop.f32.mrb[0].mxu0
        %v1747 = vadd.f32 %v1275, %v1746
        %v1748 = vpop.f32.mrb[0].mxu0
        %1749 = vmatprep.mubr.bf16.mxu0 %v1135
        %1750 = vmatmul.mubr.bf16.gmra.mrb[0].mxu0 %v1134
        %v1751 = vpop.f32.mrb[0].mxu0
        %v1752 = vadd.f32 %v1275, %v1751
        %v1753 = vpop.f32.mrb[0].mxu0
        %v1754 = vpop.f32.mrb[0].mxu0
        %v1755 = vadd.f32 %v1275, %v1754
        %v1756 = vpop.f32.mrb[0].mxu0
        %1757 = vdwg.mxu0
        %1758 = vmatprep.subr.bf16.mxu0 0
        %1759 = vmatpush1.bf16.msra.mxu0 %v1549
        %1760 = vmatprep.subr.bf16.mxu0 0
        %1761 = vmatpush1.bf16.msra.mxu0 %v1550
        %1762 = vmatprep.subr.bf16.mxu0 0
        %1763 = vmatpush1.bf16.msra.mxu0 %v1551
        %1764 = vmatprep.subr.bf16.mxu0 0
        %1765 = vmatpush1.bf16.msra.mxu0 %v1552
        %1766 = vmatprep.subr.bf16.mxu0 0
        %1767 = vmatpush1.bf16.msra.mxu0 %v1553
        %1768 = vmatprep.subr.bf16.mxu0 0
        %1769 = vmatpush1.bf16.msra.mxu0 %v1554
        %1770 = vmatprep.subr.bf16.mxu0 0
        %1771 = vmatpush1.bf16.msra.mxu0 %v1555
        %1772 = vmatprep.subr.bf16.mxu0 0
        %1773 = vmatpush1.bf16.msra.mxu0 %v1556
        %1774 = vmatprep.subr.bf16.mxu0 0
        %1775 = vmatpush1.bf16.msra.mxu0 %v1557
        %1776 = vmatprep.subr.bf16.mxu0 0
        %1777 = vmatpush1.bf16.msra.mxu0 %v1558
        %1778 = vmatprep.subr.bf16.mxu0 0
        %1779 = vmatpush1.bf16.msra.mxu0 %v1559
        %1780 = vmatprep.subr.bf16.mxu0 0
        %1781 = vmatpush1.bf16.msra.mxu0 %v1560
        %1782 = vmatprep.subr.bf16.mxu0 0
        %1783 = vmatpush1.bf16.msra.mxu0 %v1561
        %1784 = vmatprep.subr.bf16.mxu0 0
        %1785 = vmatpush1.bf16.msra.mxu0 %v1562
        %1786 = vmatprep.subr.bf16.mxu0 0
        %1787 = vmatpush1.bf16.msra.mxu0 %v1563
        %1788 = vmatprep.subr.bf16.mxu0 0
        %1789 = vmatpush1.bf16.msra.mxu0 %v1564
        %1790 = vmatprep.mubr.bf16.mxu0 %v1081
        %1791 = vmatmul.mubr.bf16.gmra.mrb[0].mxu0 %v1080
        %v1792 = vpop.f32.mrb[0].mxu0
        %v1793 = vadd.f32 %v1696, %v1792
        %v1794 = vpop.f32.mrb[0].mxu0
        %v1795 = vpop.f32.mrb[0].mxu0
        %v1796 = vadd.f32 %v1699, %v1795
        %v1797 = vpop.f32.mrb[0].mxu0
        %1798 = vmatprep.mubr.bf16.mxu0 %v1089
        %1799 = vmatmul.mubr.bf16.gmra.mrb[0].mxu0 %v1088
        %v1800 = vpop.f32.mrb[0].mxu0
        %v1801 = vadd.f32 %v1704, %v1800
        %v1802 = vpop.f32.mrb[0].mxu0
        %v1803 = vpop.f32.mrb[0].mxu0
        %v1804 = vadd.f32 %v1707, %v1803
        %v1805 = vpop.f32.mrb[0].mxu0
        %1806 = vmatprep.mubr.bf16.mxu0 %v1097
        %1807 = vmatmul.mubr.bf16.gmra.mrb[0].mxu0 %v1096
        %v1808 = vpop.f32.mrb[0].mxu0
        %v1809 = vadd.f32 %v1712, %v1808
        %v1810 = vpop.f32.mrb[0].mxu0
        %v1811 = vpop.f32.mrb[0].mxu0
        %v1812 = vadd.f32 %v1715, %v1811
        %v1813 = vpop.f32.mrb[0].mxu0
        %1814 = vmatprep.mubr.bf16.mxu0 %v1105
        %1815 = vmatmul.mubr.bf16.gmra.mrb[0].mxu0 %v1104
        %v1816 = vpop.f32.mrb[0].mxu0
        %v1817 = vadd.f32 %v1720, %v1816
        %v1818 = vpop.f32.mrb[0].mxu0
        %v1819 = vpop.f32.mrb[0].mxu0
        %v1820 = vadd.f32 %v1723, %v1819
        %v1821 = vpop.f32.mrb[0].mxu0
        %1822 = vmatprep.mubr.bf16.mxu0 %v1113
        %1823 = vmatmul.mubr.bf16.gmra.mrb[0].mxu0 %v1112
        %v1824 = vpop.f32.mrb[0].mxu0
        %v1825 = vadd.f32 %v1728, %v1824
        %v1826 = vpop.f32.mrb[0].mxu0
        %v1827 = vpop.f32.mrb[0].mxu0
        %v1828 = vadd.f32 %v1731, %v1827
        %v1829 = vpop.f32.mrb[0].mxu0
        %1830 = vmatprep.mubr.bf16.mxu0 %v1121
        %1831 = vmatmul.mubr.bf16.gmra.mrb[0].mxu0 %v1120
        %v1832 = vpop.f32.mrb[0].mxu0
        %v1833 = vadd.f32 %v1736, %v1832
        %v1834 = vpop.f32.mrb[0].mxu0
        %v1835 = vpop.f32.mrb[0].mxu0
        %v1836 = vadd.f32 %v1739, %v1835
        %v1837 = vpop.f32.mrb[0].mxu0
        %1838 = vmatprep.mubr.bf16.mxu0 %v1129
        %1839 = vmatmul.mubr.bf16.gmra.mrb[0].mxu0 %v1128
        %v1840 = vpop.f32.mrb[0].mxu0
        %v1841 = vadd.f32 %v1744, %v1840
        %v1842 = vpop.f32.mrb[0].mxu0
        %v1843 = vpop.f32.mrb[0].mxu0
        %v1844 = vadd.f32 %v1747, %v1843
        %v1845 = vpop.f32.mrb[0].mxu0
        %1846 = vmatprep.mubr.bf16.mxu0 %v1137
        %1847 = vmatmul.mubr.bf16.gmra.mrb[0].mxu0 %v1136
        %v1848 = vpop.f32.mrb[0].mxu0
        %v1849 = vadd.f32 %v1752, %v1848
        %v1850 = vpop.f32.mrb[0].mxu0
        %v1851 = vpop.f32.mrb[0].mxu0
        %v1852 = vadd.f32 %v1755, %v1851
        %v1853 = vpop.f32.mrb[0].mxu0
        %1854 = vdwg.mxu0
        %1855 = vmatprep.subr.bf16.mxu0 0
        %1856 = vmatpush1.bf16.msra.mxu0 %v1565
        %1857 = vmatprep.subr.bf16.mxu0 0
        %1858 = vmatpush1.bf16.msra.mxu0 %v1566
        %1859 = vmatprep.subr.bf16.mxu0 0
        %1860 = vmatpush1.bf16.msra.mxu0 %v1567
        %1861 = vmatprep.subr.bf16.mxu0 0
        %1862 = vmatpush1.bf16.msra.mxu0 %v1568
        %1863 = vmatprep.subr.bf16.mxu0 0
        %1864 = vmatpush1.bf16.msra.mxu0 %v1569
        %1865 = vmatprep.subr.bf16.mxu0 0
        %1866 = vmatpush1.bf16.msra.mxu0 %v1570
        %1867 = vmatprep.subr.bf16.mxu0 0
        %1868 = vmatpush1.bf16.msra.mxu0 %v1571
        %1869 = vmatprep.subr.bf16.mxu0 0
        %1870 = vmatpush1.bf16.msra.mxu0 %v1572
        %1871 = vmatprep.subr.bf16.mxu0 0
        %1872 = vmatpush1.bf16.msra.mxu0 %v1573
        %1873 = vmatprep.subr.bf16.mxu0 0
        %1874 = vmatpush1.bf16.msra.mxu0 %v1574
        %1875 = vmatprep.subr.bf16.mxu0 0
        %1876 = vmatpush1.bf16.msra.mxu0 %v1575
        %1877 = vmatprep.subr.bf16.mxu0 0
        %1878 = vmatpush1.bf16.msra.mxu0 %v1576
        %1879 = vmatprep.subr.bf16.mxu0 0
        %1880 = vmatpush1.bf16.msra.mxu0 %v1577
        %1881 = vmatprep.subr.bf16.mxu0 0
        %1882 = vmatpush1.bf16.msra.mxu0 %v1578
        %1883 = vmatprep.subr.bf16.mxu0 0
        %1884 = vmatpush1.bf16.msra.mxu0 %v1579
        %1885 = vmatprep.subr.bf16.mxu0 0
        %1886 = vmatpush1.bf16.msra.mxu0 %v1580
        %1887 = vmatprep.mubr.bf16.mxu0 %v1083
        %1888 = vmatmul.mubr.bf16.gmra.mrb[0].mxu0 %v1082
        %v1889 = vpop.f32.mrb[0].mxu0
        %v1890 = vadd.f32 %v1793, %v1889
        %v1891 = vpop.f32.mrb[0].mxu0
        %v1892 = vpop.f32.mrb[0].mxu0
        %v1893 = vadd.f32 %v1796, %v1892
        %v1894 = vpop.f32.mrb[0].mxu0
        %1895 = vmatprep.mubr.bf16.mxu0 %v1091
        %1896 = vmatmul.mubr.bf16.gmra.mrb[0].mxu0 %v1090
        %v1897 = vpop.f32.mrb[0].mxu0
        %v1898 = vadd.f32 %v1801, %v1897
        %v1899 = vpop.f32.mrb[0].mxu0
        %v1900 = vpop.f32.mrb[0].mxu0
        %v1901 = vadd.f32 %v1804, %v1900
        %v1902 = vpop.f32.mrb[0].mxu0
        %1903 = vmatprep.mubr.bf16.mxu0 %v1099
        %1904 = vmatmul.mubr.bf16.gmra.mrb[0].mxu0 %v1098
        %v1905 = vpop.f32.mrb[0].mxu0
        %v1906 = vadd.f32 %v1809, %v1905
        %v1907 = vpop.f32.mrb[0].mxu0
        %v1908 = vpop.f32.mrb[0].mxu0
        %v1909 = vadd.f32 %v1812, %v1908
        %v1910 = vpop.f32.mrb[0].mxu0
        %1911 = vmatprep.mubr.bf16.mxu0 %v1107
        %1912 = vmatmul.mubr.bf16.gmra.mrb[0].mxu0 %v1106
        %v1913 = vpop.f32.mrb[0].mxu0
        %v1914 = vadd.f32 %v1817, %v1913
        %v1915 = vpop.f32.mrb[0].mxu0
        %v1916 = vpop.f32.mrb[0].mxu0
        %v1917 = vadd.f32 %v1820, %v1916
        %v1918 = vpop.f32.mrb[0].mxu0
        %1919 = vmatprep.mubr.bf16.mxu0 %v1115
        %1920 = vmatmul.mubr.bf16.gmra.mrb[0].mxu0 %v1114
        %v1921 = vpop.f32.mrb[0].mxu0
        %v1922 = vadd.f32 %v1825, %v1921
        %v1923 = vpop.f32.mrb[0].mxu0
        %v1924 = vpop.f32.mrb[0].mxu0
        %v1925 = vadd.f32 %v1828, %v1924
        %v1926 = vpop.f32.mrb[0].mxu0
        %1927 = vmatprep.mubr.bf16.mxu0 %v1123
        %1928 = vmatmul.mubr.bf16.gmra.mrb[0].mxu0 %v1122
        %v1929 = vpop.f32.mrb[0].mxu0
        %v1930 = vadd.f32 %v1833, %v1929
        %v1931 = vpop.f32.mrb[0].mxu0
        %v1932 = vpop.f32.mrb[0].mxu0
        %v1933 = vadd.f32 %v1836, %v1932
        %v1934 = vpop.f32.mrb[0].mxu0
        %1935 = vmatprep.mubr.bf16.mxu0 %v1131
        %1936 = vmatmul.mubr.bf16.gmra.mrb[0].mxu0 %v1130
        %v1937 = vpop.f32.mrb[0].mxu0
        %v1938 = vadd.f32 %v1841, %v1937
        %v1939 = vpop.f32.mrb[0].mxu0
        %v1940 = vpop.f32.mrb[0].mxu0
        %v1941 = vadd.f32 %v1844, %v1940
        %v1942 = vpop.f32.mrb[0].mxu0
        %1943 = vmatprep.mubr.bf16.mxu0 %v1139
        %1944 = vmatmul.mubr.bf16.gmra.mrb[0].mxu0 %v1138
        %v1945 = vpop.f32.mrb[0].mxu0
        %v1946 = vadd.f32 %v1849, %v1945
        %v1947 = vpop.f32.mrb[0].mxu0
        %v1948 = vpop.f32.mrb[0].mxu0
        %v1949 = vadd.f32 %v1852, %v1948
        %v1950 = vpop.f32.mrb[0].mxu0
        %1951 = vdwg.mxu0
        %1952 = vmatprep.subr.bf16.mxu0 0
        %1953 = vmatpush1.bf16.msra.mxu0 %v1581
        %1954 = vmatprep.subr.bf16.mxu0 0
        %1955 = vmatpush1.bf16.msra.mxu0 %v1582
        %1956 = vmatprep.subr.bf16.mxu0 0
        %1957 = vmatpush1.bf16.msra.mxu0 %v1583
        %1958 = vmatprep.subr.bf16.mxu0 0
        %1959 = vmatpush1.bf16.msra.mxu0 %v1584
        %1960 = vmatprep.subr.bf16.mxu0 0
        %1961 = vmatpush1.bf16.msra.mxu0 %v1585
        %1962 = vmatprep.subr.bf16.mxu0 0
        %1963 = vmatpush1.bf16.msra.mxu0 %v1586
        %1964 = vmatprep.subr.bf16.mxu0 0
        %1965 = vmatpush1.bf16.msra.mxu0 %v1587
        %1966 = vmatprep.subr.bf16.mxu0 0
        %1967 = vmatpush1.bf16.msra.mxu0 %v1588
        %1968 = vmatprep.subr.bf16.mxu0 0
        %1969 = vmatpush1.bf16.msra.mxu0 %v1589
        %1970 = vmatprep.subr.bf16.mxu0 0
        %1971 = vmatpush1.bf16.msra.mxu0 %v1590
        %1972 = vmatprep.subr.bf16.mxu0 0
        %1973 = vmatpush1.bf16.msra.mxu0 %v1591
        %1974 = vmatprep.subr.bf16.mxu0 0
        %1975 = vmatpush1.bf16.msra.mxu0 %v1592
        %1976 = vmatprep.subr.bf16.mxu0 0
        %1977 = vmatpush1.bf16.msra.mxu0 %v1593
        %1978 = vmatprep.subr.bf16.mxu0 0
        %1979 = vmatpush1.bf16.msra.mxu0 %v1594
        %1980 = vmatprep.subr.bf16.mxu0 0
        %1981 = vmatpush1.bf16.msra.mxu0 %v1595
        %1982 = vmatprep.subr.bf16.mxu0 0
        %1983 = vmatpush1.bf16.msra.mxu0 %v1596
        %1984 = vmatprep.mubr.bf16.mxu0 %v1085
        %1985 = vmatmul.mubr.bf16.gmra.mrb[0].mxu0 %v1084
        %v1986 = vpop.f32.mrb[0].mxu0
        %v1987 = vadd.f32 %v1890, %v1986
        %v1988 = vpop.f32.mrb[0].mxu0
        %v1989 = vpop.f32.mrb[0].mxu0
        %v1990 = vadd.f32 %v1893, %v1989
        %v1991 = vpop.f32.mrb[0].mxu0
        %1992 = vmatprep.mubr.bf16.mxu0 %v1093
        %1993 = vmatmul.mubr.bf16.gmra.mrb[0].mxu0 %v1092
        %v1994 = vpop.f32.mrb[0].mxu0
        %v1995 = vadd.f32 %v1898, %v1994
        %v1996 = vpop.f32.mrb[0].mxu0
        %v1997 = vpop.f32.mrb[0].mxu0
        %v1998 = vadd.f32 %v1901, %v1997
        %v1999 = vpop.f32.mrb[0].mxu0
        %2000 = vmatprep.mubr.bf16.mxu0 %v1101
        %2001 = vmatmul.mubr.bf16.gmra.mrb[0].mxu0 %v1100
        %v2002 = vpop.f32.mrb[0].mxu0
        %v2003 = vadd.f32 %v1906, %v2002
        %v2004 = vpop.f32.mrb[0].mxu0
        %v2005 = vpop.f32.mrb[0].mxu0
        %v2006 = vadd.f32 %v1909, %v2005
        %v2007 = vpop.f32.mrb[0].mxu0
        %2008 = vmatprep.mubr.bf16.mxu0 %v1109
        %2009 = vmatmul.mubr.bf16.gmra.mrb[0].mxu0 %v1108
        %v2010 = vpop.f32.mrb[0].mxu0
        %v2011 = vadd.f32 %v1914, %v2010
        %v2012 = vpop.f32.mrb[0].mxu0
        %v2013 = vpop.f32.mrb[0].mxu0
        %v2014 = vadd.f32 %v1917, %v2013
        %v2015 = vpop.f32.mrb[0].mxu0
        %2016 = vmatprep.mubr.bf16.mxu0 %v1117
        %2017 = vmatmul.mubr.bf16.gmra.mrb[0].mxu0 %v1116
        %v2018 = vpop.f32.mrb[0].mxu0
        %v2019 = vadd.f32 %v1922, %v2018
        %v2020 = vpop.f32.mrb[0].mxu0
        %v2021 = vpop.f32.mrb[0].mxu0
        %v2022 = vadd.f32 %v1925, %v2021
        %v2023 = vpop.f32.mrb[0].mxu0
        %2024 = vmatprep.mubr.bf16.mxu0 %v1125
        %2025 = vmatmul.mubr.bf16.gmra.mrb[0].mxu0 %v1124
        %v2026 = vpop.f32.mrb[0].mxu0
        %v2027 = vadd.f32 %v1930, %v2026
        %v2028 = vpop.f32.mrb[0].mxu0
        %v2029 = vpop.f32.mrb[0].mxu0
        %v2030 = vadd.f32 %v1933, %v2029
        %v2031 = vpop.f32.mrb[0].mxu0
        %2032 = vmatprep.mubr.bf16.mxu0 %v1133
        %2033 = vmatmul.mubr.bf16.gmra.mrb[0].mxu0 %v1132
        %v2034 = vpop.f32.mrb[0].mxu0
        %v2035 = vadd.f32 %v1938, %v2034
        %v2036 = vpop.f32.mrb[0].mxu0
        %v2037 = vpop.f32.mrb[0].mxu0
        %v2038 = vadd.f32 %v1941, %v2037
        %v2039 = vpop.f32.mrb[0].mxu0
        %2040 = vmatprep.mubr.bf16.mxu0 %v1141
        %2041 = vmatmul.mubr.bf16.gmra.mrb[0].mxu0 %v1140
        %v2042 = vpop.f32.mrb[0].mxu0
        %v2043 = vadd.f32 %v1946, %v2042
        %v2044 = vpop.f32.mrb[0].mxu0
        %v2045 = vpop.f32.mrb[0].mxu0
        %v2046 = vadd.f32 %v1949, %v2045
        %v2047 = vpop.f32.mrb[0].mxu0
        %2048 = vdwg.mxu0
        %v2049 = vpack.c.bf16 %v1990, %v1987
        %v2050 = vpack.c.bf16 %v1998, %v1995
        %v2051 = vpack.c.bf16 %v2006, %v2003
        %v2052 = vpack.c.bf16 %v2014, %v2011
        %v2053 = vpack.c.bf16 %v2022, %v2019
        %v2054 = vpack.c.bf16 %v2030, %v2027
        %v2055 = vpack.c.bf16 %v2038, %v2035
        %v2056 = vpack.c.bf16 %v2046, %v2043
        %v2057 = vld [vmem:[%s5] sm:$0x1]
        %v2058 = vld [vmem:[#allocation2] sm:$0x1]
        %2060 = vset.pattern.permute.xlu0 0
        %2061 = vperm.xlu0 %2060, %v2058
        %v2062 = vpop.permute.xlu0 %2061
        %v2064 = vlaneseq
        %v2065 = vshrl.u32 %v2064, 7
        %v2066 = vsub.s32 0, %v2065
        %v2067 = vrot.slane %v2062, %v2066
        %2068 = vmatprep.subr.bf16.mxu0 0
        %2069 = vmatpush1.bf16.xpose.msra.mxu0 %v2049
        %2070 = vmatprep.subr.bf16.mxu0 0
        %2071 = vmatpush1.bf16.xpose.msra.mxu0 %v2050
        %2072 = vmatprep.subr.bf16.mxu0 0
        %2073 = vmatpush1.bf16.xpose.msra.mxu0 %v2051
        %2074 = vmatprep.subr.bf16.mxu0 0
        %2075 = vmatpush1.bf16.xpose.msra.mxu0 %v2052
        %2076 = vmatprep.subr.bf16.mxu0 0
        %2077 = vmatpush1.bf16.xpose.msra.mxu0 %v2053
        %2078 = vmatprep.subr.bf16.mxu0 0
        %2079 = vmatpush1.bf16.xpose.msra.mxu0 %v2054
        %2080 = vmatprep.subr.bf16.mxu0 0
        %2081 = vmatpush1.bf16.xpose.msra.mxu0 %v2055
        %2082 = vmatprep.subr.bf16.mxu0 0
        %2083 = vmatpush1.bf16.xpose.msra.mxu0 %v2056
        %2084 = vmatprep.subr.bf16.mxu0 0
        %2085 = vmatpush1.bf16.xpose.msra.mxu0 0
        %2086 = vmatprep.subr.bf16.mxu0 0
        %2087 = vmatpush1.bf16.xpose.msra.mxu0 0
        %2088 = vmatprep.subr.bf16.mxu0 0
        %2089 = vmatpush1.bf16.xpose.msra.mxu0 0
        %2090 = vmatprep.subr.bf16.mxu0 0
        %2091 = vmatpush1.bf16.xpose.msra.mxu0 0
        %2092 = vmatprep.subr.bf16.mxu0 0
        %2093 = vmatpush1.bf16.xpose.msra.mxu0 0
        %2094 = vmatprep.subr.bf16.mxu0 0
        %2095 = vmatpush1.bf16.xpose.msra.mxu0 0
        %2096 = vmatprep.subr.bf16.mxu0 0
        %2097 = vmatpush1.bf16.xpose.msra.mxu0 0
        %2098 = vmatprep.subr.bf16.mxu0 0
        %2099 = vmatpush1.bf16.xpose.msra.mxu0 0
        %2100 = vmatprep.mubr.bf16.mxu0 0
        %2101 = vmatmul.mubr.bf16.gmra.mrb[0].mxu0 %v2057
        %v2102 = vpop.f32.mrb[0].mxu0
        %v2103 = vadd.f32 %v2067, %v2102
        %v2104 = vpop.f32.mrb[0].mxu0
        %v2105 = vpop.f32.mrb[0].mxu0
        %v2106 = vpop.f32.mrb[0].mxu0
        %2107 = vdwg.mxu0
        %2108 = vst [vmem:[%s303] sm:$0x1] %v2103
        %s2109 = sand.u32 %s185, 1
        %s2110 = scalar_lea.sflag [#allocation5], %s2109
        %s2111 = sand.u32 %s185, 1
        %s2112 = scalar_lea.vmem [#allocation8], %s2111
        // Predicated region
        $region57: #{tpu_custom_call.1} parent=47 // pred_check
          %p2113 = pneg %p195
        $region58: #{tpu_custom_call.1} parent=47 // pred_check_branch
          %2115 = sbr.rel (%p2113) target = $region60
        $region59: #{tpu_custom_call.1} parent=47 // pred_region
          %s2117 = ssub.s32 16, 16
          %2118 = vsyncadd %s2110, %s2117
          %s2119 = smul.addr %s25, 16
          %s2120 = scalar_lea.hbm %s7, %s2119
          %s2122 = sshll.u32 %s2112, 4
          %s2123 = int_to_ptr.vmem [resolvable:$true] %s2122
          %2125 = dma.vmem_to_hbm [thread:$0]  %s2123, 16, %s2120, %s2110
        $region60: #{tpu_custom_call.1} parent=47 // pred_fallthru
          _
      $region48: #{tpu_custom_call.1} parent=5 // pred_fallthru
        _
      %p2126 = scmp.le.s32.totalorder 2, %s20
      // Predicated region
      $region61: #{tpu_custom_call.1} parent=5 // pred_check
        %p2127 = pneg %p2126
      $region62: #{tpu_custom_call.1} parent=5 // pred_check_branch
        %2129 = sbr.rel (%p2127) target = $region64
      $region63: #{tpu_custom_call.1} parent=5 // pred_region
        %s2130 = ssub.s32 %s20, 2
        // Predicated region
        $region65: #{tpu_custom_call.1} parent=63 // pred_check
          %p2131 = pneg %p201
        $region66: #{tpu_custom_call.1} parent=63 // pred_check_branch
          %2133 = sbr.rel (%p2131) target = $region68
        $region67: #{tpu_custom_call.1} parent=63 // pred_region
          %s2134 = sand.u32 %s186, 1
          %s2135 = scalar_lea.sflag [#allocation5], %s2134
          %s2136 = sand.u32 %s186, 1
          %s2137 = scalar_lea.vmem [#allocation8], %s2136
          %2138 = dma.done %s2135, 16
        $region68: #{tpu_custom_call.1} parent=63 // pred_fallthru
          _
      $region64: #{tpu_custom_call.1} parent=5 // pred_fallthru
        _
    $region6: #{tpu_custom_call.1} parent=1 // loop_footer
      %s24 = sadd.s32 1, %s20
    $region7: #{tpu_custom_call.1} parent=1 // loop_footer_branch
      %19 = sbr.rel target = $region3
    $region8: #{tpu_custom_call.1} parent=1 // loop_exit
      _
    %2139 = vsyncpa [#allocation4], 1
    %s2140 = scalar_lea.sflag [#allocation4], 1
    %2141 = vsyncpa %s2140, 1
    %2142 = vsyncpa [#allocation7], 1
    %2143 = vsyncpa [#allocation5], 1
    %s2144 = scalar_lea.sflag [#allocation5], 1
    %2145 = vsyncpa %s2144, 1

</llo_original>
